<compile_context>
chip_gen: v7x
topology: tpu7x:2x2x1
jax: 0.10.0
libtpu: 0.0.40
codegen_flags: <defaults>
</compile_context>

<pallas_src>
import functools
import math

import jax
import jax.numpy as jnp
from jax.experimental import pallas as pl
from jax.experimental.pallas import tpu as pltpu


_LN_EPS = 1e-5        # torch.nn.LayerNorm default eps
_MASK_NEG = -1e30     # finite "-inf": exp() underflows to exactly 0.0


def _gelu_tanh(x):
    # tanh-approximate GELU using only mul/add/tanh (guaranteed Mosaic lowering).
    # TODO(synk): torch.nn.GELU default is the exact erf form; erf has no
    # guaranteed Pallas/Mosaic lowering, so the tanh approximation (<1e-3
    # relative difference) is used in both the kernel and the reference.
    c = math.sqrt(2.0 / math.pi)
    return 0.5 * x * (1.0 + jnp.tanh(c * (x + 0.044715 * x * x * x)))


# ---------------------------------------------------------------------------
# Fused SwinTransformerBlock kernel:  x += Attn(LN1(x)); x += Mlp(LN2(x))
# ---------------------------------------------------------------------------
def _swin_block_kernel(x_ref, bias_ref, g1_ref, bt1_ref, wqkv_ref, bqkv_ref,
                       wproj_ref, bproj_ref, g2_ref, bt2_ref,
                       w1_ref, b1_ref, w2_ref, b2_ref, o_ref,
                       *, matmul_dtype):
    tb, n_tok, dim = x_ref.shape
    rows = tb * n_tok

    def layer_norm(v, gamma, beta):
        mu = jnp.mean(v, axis=-1, keepdims=True)
        d = v - mu
        var = jnp.mean(d * d, axis=-1, keepdims=True)
        return d * jax.lax.rsqrt(var + _LN_EPS) * gamma + beta

    def mm(a, w):
        return jnp.dot(a.astype(matmul_dtype), w.astype(matmul_dtype),
                       preferred_element_type=jnp.float32)

    # Flatten TB windows into one (TB*N, C) row block for all projections.
    x = x_ref[...].astype(jnp.float32).reshape(rows, dim)

    # ---- attention branch --------------------------------------------------
    h = layer_norm(x, g1_ref[...], bt1_ref[...])
    # q scale is already folded into the q columns of Wqkv / bqkv (prep time).
    qkv = mm(h, wqkv_ref[...]) + bqkv_ref[...]                 # (rows, 3C)
    q = qkv[:, :dim].reshape(tb, n_tok, dim)
    k = qkv[:, dim:2 * dim].reshape(tb, n_tok, dim)
    v = qkv[:, 2 * dim:].reshape(tb, n_tok, dim)

    # Channel attention for all heads and all TB windows at once:
    #   attn[b, c, d] = sum_n q[b, n, c] * k[b, n, d]
    # One batched relayout of q (whole TB block) + canonical batched matmul.
    q_t = jnp.swapaxes(q, 1, 2)                                # (tb, C, N)
    attn = jax.lax.dot_general(
        q_t.astype(matmul_dtype), k.astype(matmul_dtype),
        dimension_numbers=(((2,), (1,)), ((0,), (0,))),
        preferred_element_type=jnp.float32)                    # (tb, C, C)

    # Head block-diagonal additive mask (0 on-block, -1e30 off-block): after
    # softmax the off-block entries are exactly 0, so this equals the per-head
    # softmax + head-concat of the PyTorch module.
    attn = attn + bias_ref[...]
    attn = attn - jnp.max(attn, axis=-1, keepdims=True)
    attn = jnp.exp(attn)
    attn = attn / jnp.sum(attn, axis=-1, keepdims=True)

    #   y[b, n, d] = sum_c v[b, n, c] * attn[b, c, d]
    y = jax.lax.dot_general(
        v.astype(matmul_dtype), attn.astype(matmul_dtype),
        dimension_numbers=(((2,), (1,)), ((0,), (0,))),
        preferred_element_type=jnp.float32)                    # (tb, N, C)
    y = y.reshape(rows, dim)
    x = x + mm(y, wproj_ref[...]) + bproj_ref[...]

    # ---- MLP branch ---------------------------------------------------------
    h2 = layer_norm(x, g2_ref[...], bt2_ref[...])
    hid = _gelu_tanh(mm(h2, w1_ref[...]) + b1_ref[...])
    x = x + mm(hid, w2_ref[...]) + b2_ref[...]

    # Single full-block store.
    o_ref[...] = x.reshape(tb, n_tok, dim).astype(o_ref.dtype)


# ---------------------------------------------------------------------------
# 3x3 conv (as im2col matmul) + bias + residual-add kernel
# ---------------------------------------------------------------------------
def _conv_residual_kernel(xcol_ref, w_ref, b_ref, res_ref, o_ref, *, matmul_dtype):
    tb, n_tok, cin9 = xcol_ref.shape
    dim = o_ref.shape[-1]
    rows = tb * n_tok
    xcol = xcol_ref[...].astype(jnp.float32).reshape(rows, cin9)
    y = jnp.dot(xcol.astype(matmul_dtype), w_ref[...].astype(matmul_dtype),
                preferred_element_type=jnp.float32) + b_ref[...]
    y = y.reshape(tb, n_tok, dim) + res_ref[...].astype(jnp.float32)
    o_ref[...] = y.astype(o_ref.dtype)


# ---------------------------------------------------------------------------
# Wrappers
# ---------------------------------------------------------------------------
def _largest_divisor_leq(n, cap):
    cap = max(1, min(n, cap))
    for d in range(cap, 0, -1):
        if n % d == 0:
            return d
    return 1


def _pick_windows_per_step(num_windows, tokens, dim, hidden, max_windows_per_step):
    # Rough f32 live bytes per window inside the fused block kernel (I/O blocks
    # are double-buffered plus qkv / attention / MLP temporaries).
    per_window = 4 * (tokens * (12 * dim + 2 * hidden) + dim * dim)
    vmem_budget = 8 * 1024 * 1024     # conservative vs the 16-32 MiB scoped defaults (v7x-safe)
    cap = min(max_windows_per_step, max(1, vmem_budget // per_window))
    # Keep >= ~4 grid steps when there is enough work so the parallel grid axis
    # can shard across v7x's two TensorCores and still pipeline.
    if num_windows >= 8:
        cap = min(cap, max(1, num_windows // 4))
    return _largest_divisor_leq(num_windows, cap)


_COMPILER_PARAMS = pltpu.CompilerParams(
    dimension_semantics=("parallel",),
    vmem_limit_bytes=32 * 1024 * 1024,
)


def _const_spec(shape):
    return pl.BlockSpec(shape, lambda b: (0,) * len(shape))


def _swin_block_call(x, bias, blk, *, windows_per_step, matmul_dtype):
    B, N, C = x.shape
    hidden = blk["w1"].shape[1]
    tb = windows_per_step
    kernel = functools.partial(_swin_block_kernel, matmul_dtype=matmul_dtype)
    return pl.pallas_call(
        kernel,
        out_shape=jax.ShapeDtypeStruct((B, N, C), x.dtype),
        grid_spec=pltpu.PrefetchScalarGridSpec(
            num_scalar_prefetch=0,
            grid=(B // tb,),
            in_specs=[
                pl.BlockSpec((tb, N, C), lambda b: (b, 0, 0)),   # x (TB windows)
                _const_spec((C, C)),                             # head-mask bias
                _const_spec((1, C)), _const_spec((1, C)),        # LN1 gamma/beta
                _const_spec((C, 3 * C)), _const_spec((1, 3 * C)),  # Wqkv/bqkv
                _const_spec((C, C)), _const_spec((1, C)),        # Wproj/bproj
                _const_spec((1, C)), _const_spec((1, C)),        # LN2 gamma/beta
                _const_spec((C, hidden)), _const_spec((1, hidden)),  # fc1
                _const_spec((hidden, C)), _const_spec((1, C)),   # fc2
            ],
            out_specs=pl.BlockSpec((tb, N, C), lambda b: (b, 0, 0)),
        ),
        compiler_params=_COMPILER_PARAMS,
    )(x, bias, blk["g1"], blk["bt1"], blk["w_qkv"], blk["b_qkv"],
      blk["w_proj"], blk["b_proj"], blk["g2"], blk["bt2"],
      blk["w1"], blk["b1"], blk["w2"], blk["b2"])


def _conv_residual_call(xcol, w, b, res, *, windows_per_step, matmul_dtype):
    B, N, C9 = xcol.shape
    C = res.shape[-1]
    tb = windows_per_step
    kernel = functools.partial(_conv_residual_kernel, matmul_dtype=matmul_dtype)
    return pl.pallas_call(
        kernel,
        out_shape=jax.ShapeDtypeStruct((B, N, C), res.dtype),
        grid_spec=pltpu.PrefetchScalarGridSpec(
            num_scalar_prefetch=0,
            grid=(B // tb,),
            in_specs=[
                pl.BlockSpec((tb, N, C9), lambda b: (b, 0, 0)),  # im2col patches
                _const_spec((C9, C)),                            # conv weight (9C, C)
                _const_spec((1, C)),                             # conv bias
                pl.BlockSpec((tb, N, C), lambda b: (b, 0, 0)),   # residual (RTB shortcut)
            ],
            out_specs=pl.BlockSpec((tb, N, C), lambda b: (b, 0, 0)),
        ),
        compiler_params=_COMPILER_PARAMS,
    )(xcol, w, b, res)


def rtb_forward(x, params, x_size, *, num_heads, max_windows_per_step=512,
                matmul_dtype=jnp.float32):
    """RTB.forward: x (B, N, C) with N = H*W; returns (B, N, C)."""
    H, W = x_size
    B, N, C = x.shape
    assert N == H * W
    hidden = params["blocks"][0]["w1"].shape[1]
    tb = _pick_windows_per_step(B, N, C, hidden, max_windows_per_step)

    shortcut = x
    for blk in params["blocks"]:
        x = _swin_block_call(x, params["attn_bias"], blk,
                             windows_per_step=tb, matmul_dtype=matmul_dtype)

    # 3x3 "same" conv of the residual connection: im2col is pure layout prep
    # (plain XLA ops); the matmul + bias + shortcut add runs in Pallas.
    xi = x.reshape(B, H, W, C)
    xp = jnp.pad(xi, ((0, 0), (1, 1), (1, 1), (0, 0)))
    taps = [xp[:, di:di + H, dj:dj + W, :] for di in range(3) for dj in range(3)]
    xcol = jnp.concatenate(taps, axis=-1).reshape(B, N, 9 * C)
    return _conv_residual_call(xcol, params["conv_w_mat"], params["conv_b"],
                               shortcut, windows_per_step=tb,
                               matmul_dtype=matmul_dtype)


# ---------------------------------------------------------------------------
# Parameters (synthetic, nn.Module-shaped) + one-time kernel prep
# ---------------------------------------------------------------------------
def make_params(key, dim, depth, num_heads, mlp_ratio=4.0):
    hidden = int(dim * mlp_ratio)
    blocks = []
    for _ in range(depth):
        key, *ks = jax.random.split(key, 13)
        blocks.append(dict(
            g1=1.0 + 0.1 * jax.random.normal(ks[0], (dim,), jnp.float32),
            bt1=0.01 * jax.random.normal(ks[1], (dim,), jnp.float32),
            w_qkv=0.05 * jax.random.normal(ks[2], (dim, 3 * dim), jnp.float32),
            b_qkv=0.01 * jax.random.normal(ks[3], (3 * dim,), jnp.float32),
            w_proj=0.05 * jax.random.normal(ks[4], (dim, dim), jnp.float32),
            b_proj=0.01 * jax.random.normal(ks[5], (dim,), jnp.float32),
            g2=1.0 + 0.1 * jax.random.normal(ks[6], (dim,), jnp.float32),
            bt2=0.01 * jax.random.normal(ks[7], (dim,), jnp.float32),
            w1=0.05 * jax.random.normal(ks[8], (dim, hidden), jnp.float32),
            b1=0.01 * jax.random.normal(ks[9], (hidden,), jnp.float32),
            w2=0.05 * jax.random.normal(ks[10], (hidden, dim), jnp.float32),
            b2=0.01 * jax.random.normal(ks[11], (dim,), jnp.float32),
        ))
    key, k1, k2 = jax.random.split(key, 3)
    conv_w = 0.05 * jax.random.normal(k1, (3, 3, dim, dim), jnp.float32)  # HWIO
    conv_b = 0.01 * jax.random.normal(k2, (dim,), jnp.float32)
    return dict(blocks=blocks, conv_w=conv_w, conv_b=conv_b)


def prep_kernel_params(params, num_heads):
    """One-time (model-load) prep: fold q scale into Wqkv/bqkv, reshape 1-D
    params to (1, k) rows, flatten the conv weight for im2col, and build the
    block-diagonal head-mask bias."""
    out_blocks = []
    for blk in params["blocks"]:
        dim = blk["w_qkv"].shape[0]
        scale = float(dim // num_heads) ** -0.5
        out_blocks.append(dict(
            g1=blk["g1"].reshape(1, -1), bt1=blk["bt1"].reshape(1, -1),
            w_qkv=blk["w_qkv"].at[:, :dim].multiply(scale),
            b_qkv=blk["b_qkv"].at[:dim].multiply(scale).reshape(1, -1),
            w_proj=blk["w_proj"], b_proj=blk["b_proj"].reshape(1, -1),
            g2=blk["g2"].reshape(1, -1), bt2=blk["bt2"].reshape(1, -1),
            w1=blk["w1"], b1=blk["b1"].reshape(1, -1),
            w2=blk["w2"], b2=blk["b2"].reshape(1, -1),
        ))
    dim = params["conv_b"].shape[0]
    head_ids = jnp.arange(dim) // (dim // num_heads)
    attn_bias = jnp.where(head_ids[:, None] == head_ids[None, :],
                          0.0, _MASK_NEG).astype(jnp.float32)
    return dict(blocks=out_blocks,
                attn_bias=attn_bias,
                conv_w_mat=params["conv_w"].reshape(9 * dim, dim),
                conv_b=params["conv_b"].reshape(1, -1))


# ---------------------------------------------------------------------------
# Pure-JAX reference (mirrors the PyTorch RTB.forward)
# ---------------------------------------------------------------------------
def rtb_reference(x, params, x_size, *, num_heads):
    hi = jax.lax.Precision.HIGHEST
    H, W = x_size
    B, N, C = x.shape
    D = C // num_heads
    scale = float(D) ** -0.5

    def layer_norm(v, g, b):
        mu = v.mean(-1, keepdims=True)
        var = ((v - mu) ** 2).mean(-1, keepdims=True)
        return (v - mu) / jnp.sqrt(var + _LN_EPS) * g + b

    shortcut = x
    for blk in params["blocks"]:
        h = layer_norm(x, blk["g1"], blk["bt1"])
        qkv = jnp.einsum("bnc,cd->bnd", h, blk["w_qkv"], precision=hi) + blk["b_qkv"]
        qkv = qkv.reshape(B, N, 3, num_heads, D).transpose(2, 0, 3, 1, 4)
        q, k, v = qkv[0] * scale, qkv[1], qkv[2]                # (B, Hh, N, D)
        attn = jnp.einsum("bhnd,bhne->bhde", q, k, precision=hi)
        attn = jax.nn.softmax(attn, axis=-1)
        y = jnp.einsum("bhnd,bhde->bhne", v, attn, precision=hi)
        y = y.transpose(0, 2, 1, 3).reshape(B, N, C)
        x = x + jnp.einsum("bnc,cd->bnd", y, blk["w_proj"], precision=hi) + blk["b_proj"]
        h2 = layer_norm(x, blk["g2"], blk["bt2"])
        hid = _gelu_tanh(jnp.einsum("bnc,ch->bnh", h2, blk["w1"], precision=hi) + blk["b1"])
        x = x + jnp.einsum("bnh,hc->bnc", hid, blk["w2"], precision=hi) + blk["b2"]

    xi = x.reshape(B, H, W, C)
    y = jax.lax.conv_general_dilated(
        xi, params["conv_w"], window_strides=(1, 1), padding="SAME",
        dimension_numbers=("NHWC", "HWIO", "NHWC"), precision=hi)
    y = y + params["conv_b"]
    return y.reshape(B, N, C) + shortcut


if __name__ == "__main__":
    # Small shapes consistent with the module: 8 windows of 8x8 tokens,
    # dim=32, 4 heads, depth=2, mlp_ratio=4.0.
    B, H, W, C, num_heads, depth = 8, 8, 8, 32, 4, 2
    N = H * W

    key = jax.random.PRNGKey(0)
    kx, kp = jax.random.split(key)
    x = jax.random.normal(kx, (B, N, C), dtype=jnp.float32)

    params = make_params(kp, C, depth, num_heads, mlp_ratio=4.0)
    kernel_params = prep_kernel_params(params, num_heads)

    out = rtb_forward(x, kernel_params, (H, W), num_heads=num_heads)
    out = jax.block_until_ready(out)

    ref = rtb_reference(x, params, (H, W), num_heads=num_heads)
    assert out.shape == (B, N, C)
    max_err = float(jnp.max(jnp.abs(out - ref)))
    assert jnp.allclose(out, ref, atol=1e-3, rtol=1e-3), (
        f"mismatch vs reference (max abs err = {max_err})")
    print("KERNEL_OK")
</pallas_src>

<mosaic_0001>
module attributes {stable_mosaic.version = 11 : i64} {
  func.func @_swin_block_kernel(%arg0: i32, %arg1: memref<2x64x32xf32, #tpu.memory_space<vmem>>, %arg2: memref<32x32xf32, #tpu.memory_space<vmem>>, %arg3: memref<1x32xf32, #tpu.memory_space<vmem>>, %arg4: memref<1x32xf32, #tpu.memory_space<vmem>>, %arg5: memref<32x96xf32, #tpu.memory_space<vmem>>, %arg6: memref<1x96xf32, #tpu.memory_space<vmem>>, %arg7: memref<32x32xf32, #tpu.memory_space<vmem>>, %arg8: memref<1x32xf32, #tpu.memory_space<vmem>>, %arg9: memref<1x32xf32, #tpu.memory_space<vmem>>, %arg10: memref<1x32xf32, #tpu.memory_space<vmem>>, %arg11: memref<32x128xf32, #tpu.memory_space<vmem>>, %arg12: memref<1x128xf32, #tpu.memory_space<vmem>>, %arg13: memref<128x32xf32, #tpu.memory_space<vmem>>, %arg14: memref<1x32xf32, #tpu.memory_space<vmem>>, %arg15: memref<2x64x32xf32, #tpu.memory_space<vmem>>) attributes {dimension_semantics = [#tpu.dimension_semantics<parallel>], iteration_bounds = array<i64: 4>, scalar_prefetch = 0 : i64, scratch_operands = 0 : i64, tpu.core_type = #tpu.core_type<tc>, window_params = [{transform_indices = @transform_0, window_bounds = array<i64: 2, 64, 32>}, {pipeline_mode = #tpu.pipeline_mode<synchronous>, transform_indices = @transform_1, window_bounds = array<i64: 32, 32>}, {pipeline_mode = #tpu.pipeline_mode<synchronous>, transform_indices = @transform_2, window_bounds = array<i64: 1, 32>}, {pipeline_mode = #tpu.pipeline_mode<synchronous>, transform_indices = @transform_3, window_bounds = array<i64: 1, 32>}, {pipeline_mode = #tpu.pipeline_mode<synchronous>, transform_indices = @transform_4, window_bounds = array<i64: 32, 96>}, {pipeline_mode = #tpu.pipeline_mode<synchronous>, transform_indices = @transform_5, window_bounds = array<i64: 1, 96>}, {pipeline_mode = #tpu.pipeline_mode<synchronous>, transform_indices = @transform_6, window_bounds = array<i64: 32, 32>}, {pipeline_mode = #tpu.pipeline_mode<synchronous>, transform_indices = @transform_7, window_bounds = array<i64: 1, 32>}, {pipeline_mode = #tpu.pipeline_mode<synchronous>, transform_indices = @transform_8, window_bounds = array<i64: 1, 32>}, {pipeline_mode = #tpu.pipeline_mode<synchronous>, transform_indices = @transform_9, window_bounds = array<i64: 1, 32>}, {pipeline_mode = #tpu.pipeline_mode<synchronous>, transform_indices = @transform_10, window_bounds = array<i64: 32, 128>}, {pipeline_mode = #tpu.pipeline_mode<synchronous>, transform_indices = @transform_11, window_bounds = array<i64: 1, 128>}, {pipeline_mode = #tpu.pipeline_mode<synchronous>, transform_indices = @transform_12, window_bounds = array<i64: 128, 32>}, {pipeline_mode = #tpu.pipeline_mode<synchronous>, transform_indices = @transform_13, window_bounds = array<i64: 1, 32>}, {transform_indices = @transform_14, window_bounds = array<i64: 2, 64, 32>}]} {
    %c0 = arith.constant 0 : index
    %c0_0 = arith.constant 0 : index
    %c0_1 = arith.constant 0 : index
    %0 = vector.load %arg1[%c0, %c0_0, %c0_1] : memref<2x64x32xf32, #tpu.memory_space<vmem>>, vector<2x64x32xf32>
    %1 = vector.shape_cast %0 : vector<2x64x32xf32> to vector<128x32xf32>
    %c0_2 = arith.constant 0 : index
    %c0_3 = arith.constant 0 : index
    %2 = vector.load %arg3[%c0_2, %c0_3] : memref<1x32xf32, #tpu.memory_space<vmem>>, vector<1x32xf32>
    %c0_4 = arith.constant 0 : index
    %c0_5 = arith.constant 0 : index
    %3 = vector.load %arg4[%c0_4, %c0_5] : memref<1x32xf32, #tpu.memory_space<vmem>>, vector<1x32xf32>
    %cst = arith.constant dense<0.000000e+00> : vector<128xf32>
    %4 = vector.multi_reduction <add>, %1, %cst [1] : vector<128x32xf32> to vector<128xf32>
    %5 = vector.shape_cast %4 : vector<128xf32> to vector<128x1xf32>
    %cst_6 = arith.constant 3.200000e+01 : f32
    %6 = vector.broadcast %cst_6 : f32 to vector<128x1xf32>
    %7 = arith.divf %5, %6 : vector<128x1xf32>
    %8 = vector.broadcast %7 : vector<128x1xf32> to vector<128x32xf32>
    %9 = arith.subf %1, %8 : vector<128x32xf32>
    %10 = arith.mulf %9, %9 : vector<128x32xf32>
    %cst_7 = arith.constant dense<0.000000e+00> : vector<128xf32>
    %11 = vector.multi_reduction <add>, %10, %cst_7 [1] : vector<128x32xf32> to vector<128xf32>
    %12 = vector.shape_cast %11 : vector<128xf32> to vector<128x1xf32>
    %cst_8 = arith.constant 3.200000e+01 : f32
    %13 = vector.broadcast %cst_8 : f32 to vector<128x1xf32>
    %14 = arith.divf %12, %13 : vector<128x1xf32>
    %cst_9 = arith.constant 9.99999974E-6 : f32
    %15 = vector.broadcast %cst_9 : f32 to vector<128x1xf32>
    %16 = arith.addf %14, %15 : vector<128x1xf32>
    %17 = math.rsqrt %16 : vector<128x1xf32>
    %18 = vector.broadcast %17 : vector<128x1xf32> to vector<128x32xf32>
    %19 = arith.mulf %9, %18 : vector<128x32xf32>
    %20 = vector.broadcast %2 : vector<1x32xf32> to vector<128x32xf32>
    %21 = arith.mulf %19, %20 : vector<128x32xf32>
    %22 = vector.broadcast %3 : vector<1x32xf32> to vector<128x32xf32>
    %23 = arith.addf %21, %22 : vector<128x32xf32>
    %c0_10 = arith.constant 0 : index
    %c0_11 = arith.constant 0 : index
    %24 = vector.load %arg5[%c0_10, %c0_11] : memref<32x96xf32, #tpu.memory_space<vmem>>, vector<32x96xf32>
    %cst_12 = arith.constant dense<0.000000e+00> : vector<128x96xf32>
    %25 = tpu.matmul %23, %24, %cst_12 {dimension_numbers = #tpu.dot_dimension_numbers<[1], [0], [0], [1], [0, 0, 1, 1], [], []>} : vector<128x32xf32>, vector<32x96xf32>, vector<128x96xf32> -> vector<128x96xf32>
    %c0_13 = arith.constant 0 : index
    %c0_14 = arith.constant 0 : index
    %26 = vector.load %arg6[%c0_13, %c0_14] : memref<1x96xf32, #tpu.memory_space<vmem>>, vector<1x96xf32>
    %27 = vector.broadcast %26 : vector<1x96xf32> to vector<128x96xf32>
    %28 = arith.addf %25, %27 : vector<128x96xf32>
    %29 = vector.extract_strided_slice %28 {offsets = [0, 0], sizes = [128, 32], strides = [1, 1]} : vector<128x96xf32> to vector<128x32xf32>
    %30 = vector.shape_cast %29 : vector<128x32xf32> to vector<2x64x32xf32>
    %31 = vector.extract_strided_slice %28 {offsets = [0, 32], sizes = [128, 32], strides = [1, 1]} : vector<128x96xf32> to vector<128x32xf32>
    %32 = vector.shape_cast %31 : vector<128x32xf32> to vector<2x64x32xf32>
    %33 = vector.extract_strided_slice %28 {offsets = [0, 64], sizes = [128, 32], strides = [1, 1]} : vector<128x96xf32> to vector<128x32xf32>
    %34 = vector.shape_cast %33 : vector<128x32xf32> to vector<2x64x32xf32>
    %35 = tpu.transpose %30, [0, 2, 1] : vector<2x64x32xf32> -> vector<2x32x64xf32>
    %cst_15 = arith.constant dense<0.000000e+00> : vector<2x32x32xf32>
    %36 = tpu.matmul %35, %32, %cst_15 {dimension_numbers = #tpu.dot_dimension_numbers<[2], [1], [1], [2], [0, 0, 0, 1, 1, 2], [0], [0]>} : vector<2x32x64xf32>, vector<2x64x32xf32>, vector<2x32x32xf32> -> vector<2x32x32xf32>
    %c0_16 = arith.constant 0 : index
    %c0_17 = arith.constant 0 : index
    %37 = vector.load %arg2[%c0_16, %c0_17] : memref<32x32xf32, #tpu.memory_space<vmem>>, vector<32x32xf32>
    %38 = vector.shape_cast %37 : vector<32x32xf32> to vector<1x32x32xf32>
    %39 = vector.broadcast %38 : vector<1x32x32xf32> to vector<2x32x32xf32>
    %40 = arith.addf %36, %39 : vector<2x32x32xf32>
    %cst_18 = arith.constant dense<0xFF800000> : vector<2x32xf32>
    %41 = vector.multi_reduction <maximumf>, %40, %cst_18 [2] : vector<2x32x32xf32> to vector<2x32xf32>
    %42 = vector.shape_cast %41 : vector<2x32xf32> to vector<2x32x1xf32>
    %43 = vector.broadcast %42 : vector<2x32x1xf32> to vector<2x32x32xf32>
    %44 = arith.subf %40, %43 : vector<2x32x32xf32>
    %45 = math.exp %44 : vector<2x32x32xf32>
    %cst_19 = arith.constant dense<0.000000e+00> : vector<2x32xf32>
    %46 = vector.multi_reduction <add>, %45, %cst_19 [2] : vector<2x32x32xf32> to vector<2x32xf32>
    %47 = vector.shape_cast %46 : vector<2x32xf32> to vector<2x32x1xf32>
    %48 = vector.broadcast %47 : vector<2x32x1xf32> to vector<2x32x32xf32>
    %49 = arith.divf %45, %48 : vector<2x32x32xf32>
    %cst_20 = arith.constant dense<0.000000e+00> : vector<2x64x32xf32>
    %50 = tpu.matmul %34, %49, %cst_20 {dimension_numbers = #tpu.dot_dimension_numbers<[2], [1], [1], [2], [0, 0, 0, 1, 1, 2], [0], [0]>} : vector<2x64x32xf32>, vector<2x32x32xf32>, vector<2x64x32xf32> -> vector<2x64x32xf32>
    %51 = vector.shape_cast %50 : vector<2x64x32xf32> to vector<128x32xf32>
    %c0_21 = arith.constant 0 : index
    %c0_22 = arith.constant 0 : index
    %52 = vector.load %arg7[%c0_21, %c0_22] : memref<32x32xf32, #tpu.memory_space<vmem>>, vector<32x32xf32>
    %cst_23 = arith.constant dense<0.000000e+00> : vector<128x32xf32>
    %53 = tpu.matmul %51, %52, %cst_23 {dimension_numbers = #tpu.dot_dimension_numbers<[1], [0], [0], [1], [0, 0, 1, 1], [], []>} : vector<128x32xf32>, vector<32x32xf32>, vector<128x32xf32> -> vector<128x32xf32>
    %54 = arith.addf %1, %53 : vector<128x32xf32>
    %c0_24 = arith.constant 0 : index
    %c0_25 = arith.constant 0 : index
    %55 = vector.load %arg8[%c0_24, %c0_25] : memref<1x32xf32, #tpu.memory_space<vmem>>, vector<1x32xf32>
    %56 = vector.broadcast %55 : vector<1x32xf32> to vector<128x32xf32>
    %57 = arith.addf %54, %56 : vector<128x32xf32>
    %c0_26 = arith.constant 0 : index
    %c0_27 = arith.constant 0 : index
    %58 = vector.load %arg9[%c0_26, %c0_27] : memref<1x32xf32, #tpu.memory_space<vmem>>, vector<1x32xf32>
    %c0_28 = arith.constant 0 : index
    %c0_29 = arith.constant 0 : index
    %59 = vector.load %arg10[%c0_28, %c0_29] : memref<1x32xf32, #tpu.memory_space<vmem>>, vector<1x32xf32>
    %cst_30 = arith.constant dense<0.000000e+00> : vector<128xf32>
    %60 = vector.multi_reduction <add>, %57, %cst_30 [1] : vector<128x32xf32> to vector<128xf32>
    %61 = vector.shape_cast %60 : vector<128xf32> to vector<128x1xf32>
    %cst_31 = arith.constant 3.200000e+01 : f32
    %62 = vector.broadcast %cst_31 : f32 to vector<128x1xf32>
    %63 = arith.divf %61, %62 : vector<128x1xf32>
    %64 = vector.broadcast %63 : vector<128x1xf32> to vector<128x32xf32>
    %65 = arith.subf %57, %64 : vector<128x32xf32>
    %66 = arith.mulf %65, %65 : vector<128x32xf32>
    %cst_32 = arith.constant dense<0.000000e+00> : vector<128xf32>
    %67 = vector.multi_reduction <add>, %66, %cst_32 [1] : vector<128x32xf32> to vector<128xf32>
    %68 = vector.shape_cast %67 : vector<128xf32> to vector<128x1xf32>
    %cst_33 = arith.constant 3.200000e+01 : f32
    %69 = vector.broadcast %cst_33 : f32 to vector<128x1xf32>
    %70 = arith.divf %68, %69 : vector<128x1xf32>
    %cst_34 = arith.constant 9.99999974E-6 : f32
    %71 = vector.broadcast %cst_34 : f32 to vector<128x1xf32>
    %72 = arith.addf %70, %71 : vector<128x1xf32>
    %73 = math.rsqrt %72 : vector<128x1xf32>
    %74 = vector.broadcast %73 : vector<128x1xf32> to vector<128x32xf32>
    %75 = arith.mulf %65, %74 : vector<128x32xf32>
    %76 = vector.broadcast %58 : vector<1x32xf32> to vector<128x32xf32>
    %77 = arith.mulf %75, %76 : vector<128x32xf32>
    %78 = vector.broadcast %59 : vector<1x32xf32> to vector<128x32xf32>
    %79 = arith.addf %77, %78 : vector<128x32xf32>
    %c0_35 = arith.constant 0 : index
    %c0_36 = arith.constant 0 : index
    %80 = vector.load %arg11[%c0_35, %c0_36] : memref<32x128xf32, #tpu.memory_space<vmem>>, vector<32x128xf32>
    %cst_37 = arith.constant dense<0.000000e+00> : vector<128x128xf32>
    %81 = tpu.matmul %79, %80, %cst_37 {dimension_numbers = #tpu.dot_dimension_numbers<[1], [0], [0], [1], [0, 0, 1, 1], [], []>} : vector<128x32xf32>, vector<32x128xf32>, vector<128x128xf32> -> vector<128x128xf32>
    %c0_38 = arith.constant 0 : index
    %c0_39 = arith.constant 0 : index
    %82 = vector.load %arg12[%c0_38, %c0_39] : memref<1x128xf32, #tpu.memory_space<vmem>>, vector<1x128xf32>
    %83 = vector.broadcast %82 : vector<1x128xf32> to vector<128x128xf32>
    %84 = arith.addf %81, %83 : vector<128x128xf32>
    %cst_40 = arith.constant 5.000000e-01 : f32
    %85 = vector.broadcast %cst_40 : f32 to vector<128x128xf32>
    %86 = arith.mulf %85, %84 : vector<128x128xf32>
    %cst_41 = arith.constant 4.471500e-02 : f32
    %87 = vector.broadcast %cst_41 : f32 to vector<128x128xf32>
    %88 = arith.mulf %87, %84 : vector<128x128xf32>
    %89 = arith.mulf %88, %84 : vector<128x128xf32>
    %90 = arith.mulf %89, %84 : vector<128x128xf32>
    %91 = arith.addf %84, %90 : vector<128x128xf32>
    %cst_42 = arith.constant 0.797884583 : f32
    %92 = vector.broadcast %cst_42 : f32 to vector<128x128xf32>
    %93 = arith.mulf %92, %91 : vector<128x128xf32>
    %94 = math.tanh %93 : vector<128x128xf32>
    %cst_43 = arith.constant 1.000000e+00 : f32
    %95 = vector.broadcast %cst_43 : f32 to vector<128x128xf32>
    %96 = arith.addf %95, %94 : vector<128x128xf32>
    %97 = arith.mulf %86, %96 : vector<128x128xf32>
    %c0_44 = arith.constant 0 : index
    %c0_45 = arith.constant 0 : index
    %98 = vector.load %arg13[%c0_44, %c0_45] : memref<128x32xf32, #tpu.memory_space<vmem>>, vector<128x32xf32>
    %cst_46 = arith.constant dense<0.000000e+00> : vector<128x32xf32>
    %99 = tpu.matmul %97, %98, %cst_46 {dimension_numbers = #tpu.dot_dimension_numbers<[1], [0], [0], [1], [0, 0, 1, 1], [], []>} : vector<128x128xf32>, vector<128x32xf32>, vector<128x32xf32> -> vector<128x32xf32>
    %100 = arith.addf %57, %99 : vector<128x32xf32>
    %c0_47 = arith.constant 0 : index
    %c0_48 = arith.constant 0 : index
    %101 = vector.load %arg14[%c0_47, %c0_48] : memref<1x32xf32, #tpu.memory_space<vmem>>, vector<1x32xf32>
    %102 = vector.broadcast %101 : vector<1x32xf32> to vector<128x32xf32>
    %103 = arith.addf %100, %102 : vector<128x32xf32>
    %104 = vector.shape_cast %103 : vector<128x32xf32> to vector<2x64x32xf32>
    %c0_49 = arith.constant 0 : index
    %c0_50 = arith.constant 0 : index
    %c0_51 = arith.constant 0 : index
    %105 = vector.load %arg15[%c0_49, %c0_50, %c0_51] : memref<2x64x32xf32, #tpu.memory_space<vmem>>, vector<2x64x32xf32>
    tpu.vector_store %arg15[%c0_49, %c0_50, %c0_51], %104 {strides = array<i32>} : memref<2x64x32xf32, #tpu.memory_space<vmem>>, vector<2x64x32xf32>,
    return
  }
  func.func @transform_0(%arg0: i32) -> (i32, i32, i32) {
    %c0_i32 = arith.constant 0 : i32
    %c0_i32_0 = arith.constant 0 : i32
    %c0_i32_1 = arith.constant 0 : i32
    return %arg0, %c0_i32, %c0_i32_0 : i32, i32, i32
  }
  func.func @transform_1(%arg0: i32) -> (i32, i32) {
    %c0_i32 = arith.constant 0 : i32
    %c0_i32_0 = arith.constant 0 : i32
    %c0_i32_1 = arith.constant 0 : i32
    return %c0_i32, %c0_i32_0 : i32, i32
  }
  func.func @transform_2(%arg0: i32) -> (i32, i32) {
    %c0_i32 = arith.constant 0 : i32
    %c0_i32_0 = arith.constant 0 : i32
    %c0_i32_1 = arith.constant 0 : i32
    return %c0_i32, %c0_i32_0 : i32, i32
  }
  func.func @transform_3(%arg0: i32) -> (i32, i32) {
    %c0_i32 = arith.constant 0 : i32
    %c0_i32_0 = arith.constant 0 : i32
    %c0_i32_1 = arith.constant 0 : i32
    return %c0_i32, %c0_i32_0 : i32, i32
  }
  func.func @transform_4(%arg0: i32) -> (i32, i32) {
    %c0_i32 = arith.constant 0 : i32
    %c0_i32_0 = arith.constant 0 : i32
    %c0_i32_1 = arith.constant 0 : i32
    return %c0_i32, %c0_i32_0 : i32, i32
  }
  func.func @transform_5(%arg0: i32) -> (i32, i32) {
    %c0_i32 = arith.constant 0 : i32
    %c0_i32_0 = arith.constant 0 : i32
    %c0_i32_1 = arith.constant 0 : i32
    return %c0_i32, %c0_i32_0 : i32, i32
  }
  func.func @transform_6(%arg0: i32) -> (i32, i32) {
    %c0_i32 = arith.constant 0 : i32
    %c0_i32_0 = arith.constant 0 : i32
    %c0_i32_1 = arith.constant 0 : i32
    return %c0_i32, %c0_i32_0 : i32, i32
  }
  func.func @transform_7(%arg0: i32) -> (i32, i32) {
    %c0_i32 = arith.constant 0 : i32
    %c0_i32_0 = arith.constant 0 : i32
    %c0_i32_1 = arith.constant 0 : i32
    return %c0_i32, %c0_i32_0 : i32, i32
  }
  func.func @transform_8(%arg0: i32) -> (i32, i32) {
    %c0_i32 = arith.constant 0 : i32
    %c0_i32_0 = arith.constant 0 : i32
    %c0_i32_1 = arith.constant 0 : i32
    return %c0_i32, %c0_i32_0 : i32, i32
  }
  func.func @transform_9(%arg0: i32) -> (i32, i32) {
    %c0_i32 = arith.constant 0 : i32
    %c0_i32_0 = arith.constant 0 : i32
    %c0_i32_1 = arith.constant 0 : i32
    return %c0_i32, %c0_i32_0 : i32, i32
  }
  func.func @transform_10(%arg0: i32) -> (i32, i32) {
    %c0_i32 = arith.constant 0 : i32
    %c0_i32_0 = arith.constant 0 : i32
    %c0_i32_1 = arith.constant 0 : i32
    return %c0_i32, %c0_i32_0 : i32, i32
  }
  func.func @transform_11(%arg0: i32) -> (i32, i32) {
    %c0_i32 = arith.constant 0 : i32
    %c0_i32_0 = arith.constant 0 : i32
    %c0_i32_1 = arith.constant 0 : i32
    return %c0_i32, %c0_i32_0 : i32, i32
  }
  func.func @transform_12(%arg0: i32) -> (i32, i32) {
    %c0_i32 = arith.constant 0 : i32
    %c0_i32_0 = arith.constant 0 : i32
    %c0_i32_1 = arith.constant 0 : i32
    return %c0_i32, %c0_i32_0 : i32, i32
  }
  func.func @transform_13(%arg0: i32) -> (i32, i32) {
    %c0_i32 = arith.constant 0 : i32
    %c0_i32_0 = arith.constant 0 : i32
    %c0_i32_1 = arith.constant 0 : i32
    return %c0_i32, %c0_i32_0 : i32, i32
  }
  func.func @transform_14(%arg0: i32) -> (i32, i32, i32) {
    %c0_i32 = arith.constant 0 : i32
    %c0_i32_0 = arith.constant 0 : i32
    %c0_i32_1 = arith.constant 0 : i32
    return %arg0, %c0_i32, %c0_i32_0 : i32, i32, i32
  }
}

</mosaic_0001>

<llo_original>
// kernel: tpu_custom_call.1
$region0: #{tpu_custom_call.1}
  #allocation0 [shape = 'u32[]', space=smem, size = 0x4, offset = 0x4, fixed_abs, tag = 'smem constant byte address 0x4 - core index']
  #allocation1 [shape = 'u32[144,128]{1,0:T(1,128)}', space=vmem, size = 0x12000, scoped, tag = 'internal scratch']
  %s0 = inlined_call_operand.vmem [shape: f32[8,64,32], index: 0, kind: input, shape index: {}]
  %s1 = inlined_call_operand.vmem [shape: f32[32,32], index: 1, kind: input, shape index: {}]
  %s2 = inlined_call_operand.vmem [shape: f32[1,32], index: 2, kind: input, shape index: {}]
  %s3 = inlined_call_operand.vmem [shape: f32[1,32], index: 3, kind: input, shape index: {}]
  %s4 = inlined_call_operand.vmem [shape: f32[32,96], index: 4, kind: input, shape index: {}]
  %s5 = inlined_call_operand.vmem [shape: f32[1,96], index: 5, kind: input, shape index: {}]
  %s6 = inlined_call_operand.vmem [shape: f32[32,32], index: 6, kind: input, shape index: {}]
  %s7 = inlined_call_operand.vmem [shape: f32[1,32], index: 7, kind: input, shape index: {}]
  %s8 = inlined_call_operand.vmem [shape: f32[1,32], index: 8, kind: input, shape index: {}]
  %s9 = inlined_call_operand.vmem [shape: f32[1,32], index: 9, kind: input, shape index: {}]
  %s10 = inlined_call_operand.vmem [shape: f32[32,128], index: 10, kind: input, shape index: {}]
  %s11 = inlined_call_operand.vmem [shape: f32[1,128], index: 11, kind: input, shape index: {}]
  %s12 = inlined_call_operand.vmem [shape: f32[128,32], index: 12, kind: input, shape index: {}]
  %s13 = inlined_call_operand.vmem [shape: f32[1,32], index: 13, kind: input, shape index: {}]
  %s14 = inlined_call_operand.vmem [shape: f32[8,64,32], index: 14, kind: output, shape index: {}]
  %s15 = sld [smem:[#allocation0]]
  $region89: #{tpu_custom_call.1} parent=0
    _
  %s17 = ssub.s32 1, %s15
  %s18 = scalar_select 0, %s17, %s15
  loop: start=0, step=1, limit=6
  $region2: #{tpu_custom_call.1} parent=0 // loop_pre_header
    _
  $region3: #{tpu_custom_call.1} parent=0 // loop_header
    %s20 = sphi 0, %s24
    %p21 = scmp.ge.s32.totalorder %s20, 6
    %s30 = sphi 0, %s32
    %s33 = sphi 0, %s30
    %s34 = sphi 0, %s33
    %s50 = sphi 0, %s34
    %s54 = sphi 0, %s54
    %s56 = sphi 0, %s54
    %s57 = sphi 0, %s56
    %s71 = sphi 0, %s57
    %s75 = sphi 0, %s75
    %s77 = sphi 0, %s75
    %s78 = sphi 0, %s77
    %s92 = sphi 0, %s78
    %s96 = sphi 0, %s96
    %s98 = sphi 0, %s96
    %s99 = sphi 0, %s98
    %s113 = sphi 0, %s99
    %s117 = sphi 0, %s117
    %s119 = sphi 0, %s117
    %s120 = sphi 0, %s119
    %s134 = sphi 0, %s120
    %s138 = sphi 0, %s138
    %s140 = sphi 0, %s138
    %s141 = sphi 0, %s140
    %s155 = sphi 0, %s141
    %s159 = sphi 0, %s159
    %s161 = sphi 0, %s159
    %s162 = sphi 0, %s161
    %s176 = sphi 0, %s162
    %s180 = sphi 0, %s180
    %s182 = sphi 0, %s180
    %s183 = sphi 0, %s182
    %s197 = sphi 0, %s183
    %s201 = sphi 0, %s201
    %s203 = sphi 0, %s201
    %s204 = sphi 0, %s203
    %s218 = sphi 0, %s204
    %s222 = sphi 0, %s222
    %s224 = sphi 0, %s222
    %s225 = sphi 0, %s224
    %s239 = sphi 0, %s225
    %s243 = sphi 0, %s243
    %s245 = sphi 0, %s243
    %s246 = sphi 0, %s245
    %s260 = sphi 0, %s246
    %s264 = sphi 0, %s264
    %s266 = sphi 0, %s264
    %s267 = sphi 0, %s266
    %s281 = sphi 0, %s267
    %s285 = sphi 0, %s285
    %s287 = sphi 0, %s285
    %s288 = sphi 0, %s287
    %s302 = sphi 0, %s288
    %s306 = sphi 0, %s306
    %s308 = sphi 0, %s306
    %s309 = sphi 0, %s308
    %s323 = sphi 0, %s309
    %s329 = sphi 0, %s331
    %s332 = sphi 0, %s329
    %s333 = sphi 0, %s332
    %s349 = sphi 0, %s333
  $region4: #{tpu_custom_call.1} parent=0 // loop_header_branch
    %23 = sbr.rel (%p21) target = $region8
  $region5: #{tpu_custom_call.1} parent=0 // loop_body
    %s25 = ssub.s32 %s20, 1
    %s26 = ssub.s32 %s20, 2
    %s27 = sadd.s32 %s20, 1
    %s28 = ssub.s32 %s20, %s27
    %p29 = scmp.eq.s32.totalorder %s28, 0
    %s31 = sadd.s32 %s30, 1
    %s32 = scalar_select %p29, %s30, %s31
    %p35 = pneg %p29
    %p36 = scmp.eq.s32.totalorder %s20, 3
    %p37 = por %p35, %p36
    %p38 = scmp.ne.s32.totalorder %s30, %s33
    %p39 = scmp.eq.s32.totalorder %s20, 0
    %p40 = por %p38, %p39
    %p41 = scmp.ne.s32.totalorder %s30, %s33
    %p42 = scmp.eq.s32.totalorder %s25, 3
    %p43 = por %p41, %p42
    %p44 = scmp.ne.s32.totalorder %s33, %s34
    %p45 = scmp.eq.s32.totalorder %s25, 0
    %p46 = por %p44, %p45
    %p47 = scmp.ne.s32.totalorder %s33, %s34
    %p48 = scmp.eq.s32.totalorder %s26, 3
    %p49 = por %p47, %p48
    %p51 = scmp.ne.s32.totalorder %s34, %s50
    %p52 = scmp.eq.s32.totalorder %s26, 0
    %p53 = por %p51, %p52
    %s55 = sadd.s32 %s54, 1
    %p58 = scmp.eq.s32.totalorder %s20, 3
    %p59 = scmp.ne.s32.totalorder %s54, %s56
    %p60 = scmp.eq.s32.totalorder %s20, 0
    %p61 = por %p59, %p60
    %p62 = scmp.ne.s32.totalorder %s54, %s56
    %p63 = scmp.eq.s32.totalorder %s25, 3
    %p64 = por %p62, %p63
    %p65 = scmp.ne.s32.totalorder %s56, %s57
    %p66 = scmp.eq.s32.totalorder %s25, 0
    %p67 = por %p65, %p66
    %p68 = scmp.ne.s32.totalorder %s56, %s57
    %p69 = scmp.eq.s32.totalorder %s26, 3
    %p70 = por %p68, %p69
    %p72 = scmp.ne.s32.totalorder %s57, %s71
    %p73 = scmp.eq.s32.totalorder %s26, 0
    %p74 = por %p72, %p73
    %s76 = sadd.s32 %s75, 1
    %p79 = scmp.eq.s32.totalorder %s20, 3
    %p80 = scmp.ne.s32.totalorder %s75, %s77
    %p81 = scmp.eq.s32.totalorder %s20, 0
    %p82 = por %p80, %p81
    %p83 = scmp.ne.s32.totalorder %s75, %s77
    %p84 = scmp.eq.s32.totalorder %s25, 3
    %p85 = por %p83, %p84
    %p86 = scmp.ne.s32.totalorder %s77, %s78
    %p87 = scmp.eq.s32.totalorder %s25, 0
    %p88 = por %p86, %p87
    %p89 = scmp.ne.s32.totalorder %s77, %s78
    %p90 = scmp.eq.s32.totalorder %s26, 3
    %p91 = por %p89, %p90
    %p93 = scmp.ne.s32.totalorder %s78, %s92
    %p94 = scmp.eq.s32.totalorder %s26, 0
    %p95 = por %p93, %p94
    %s97 = sadd.s32 %s96, 1
    %p100 = scmp.eq.s32.totalorder %s20, 3
    %p101 = scmp.ne.s32.totalorder %s96, %s98
    %p102 = scmp.eq.s32.totalorder %s20, 0
    %p103 = por %p101, %p102
    %p104 = scmp.ne.s32.totalorder %s96, %s98
    %p105 = scmp.eq.s32.totalorder %s25, 3
    %p106 = por %p104, %p105
    %p107 = scmp.ne.s32.totalorder %s98, %s99
    %p108 = scmp.eq.s32.totalorder %s25, 0
    %p109 = por %p107, %p108
    %p110 = scmp.ne.s32.totalorder %s98, %s99
    %p111 = scmp.eq.s32.totalorder %s26, 3
    %p112 = por %p110, %p111
    %p114 = scmp.ne.s32.totalorder %s99, %s113
    %p115 = scmp.eq.s32.totalorder %s26, 0
    %p116 = por %p114, %p115
    %s118 = sadd.s32 %s117, 1
    %p121 = scmp.eq.s32.totalorder %s20, 3
    %p122 = scmp.ne.s32.totalorder %s117, %s119
    %p123 = scmp.eq.s32.totalorder %s20, 0
    %p124 = por %p122, %p123
    %p125 = scmp.ne.s32.totalorder %s117, %s119
    %p126 = scmp.eq.s32.totalorder %s25, 3
    %p127 = por %p125, %p126
    %p128 = scmp.ne.s32.totalorder %s119, %s120
    %p129 = scmp.eq.s32.totalorder %s25, 0
    %p130 = por %p128, %p129
    %p131 = scmp.ne.s32.totalorder %s119, %s120
    %p132 = scmp.eq.s32.totalorder %s26, 3
    %p133 = por %p131, %p132
    %p135 = scmp.ne.s32.totalorder %s120, %s134
    %p136 = scmp.eq.s32.totalorder %s26, 0
    %p137 = por %p135, %p136
    %s139 = sadd.s32 %s138, 1
    %p142 = scmp.eq.s32.totalorder %s20, 3
    %p143 = scmp.ne.s32.totalorder %s138, %s140
    %p144 = scmp.eq.s32.totalorder %s20, 0
    %p145 = por %p143, %p144
    %p146 = scmp.ne.s32.totalorder %s138, %s140
    %p147 = scmp.eq.s32.totalorder %s25, 3
    %p148 = por %p146, %p147
    %p149 = scmp.ne.s32.totalorder %s140, %s141
    %p150 = scmp.eq.s32.totalorder %s25, 0
    %p151 = por %p149, %p150
    %p152 = scmp.ne.s32.totalorder %s140, %s141
    %p153 = scmp.eq.s32.totalorder %s26, 3
    %p154 = por %p152, %p153
    %p156 = scmp.ne.s32.totalorder %s141, %s155
    %p157 = scmp.eq.s32.totalorder %s26, 0
    %p158 = por %p156, %p157
    %s160 = sadd.s32 %s159, 1
    %p163 = scmp.eq.s32.totalorder %s20, 3
    %p164 = scmp.ne.s32.totalorder %s159, %s161
    %p165 = scmp.eq.s32.totalorder %s20, 0
    %p166 = por %p164, %p165
    %p167 = scmp.ne.s32.totalorder %s159, %s161
    %p168 = scmp.eq.s32.totalorder %s25, 3
    %p169 = por %p167, %p168
    %p170 = scmp.ne.s32.totalorder %s161, %s162
    %p171 = scmp.eq.s32.totalorder %s25, 0
    %p172 = por %p170, %p171
    %p173 = scmp.ne.s32.totalorder %s161, %s162
    %p174 = scmp.eq.s32.totalorder %s26, 3
    %p175 = por %p173, %p174
    %p177 = scmp.ne.s32.totalorder %s162, %s176
    %p178 = scmp.eq.s32.totalorder %s26, 0
    %p179 = por %p177, %p178
    %s181 = sadd.s32 %s180, 1
    %p184 = scmp.eq.s32.totalorder %s20, 3
    %p185 = scmp.ne.s32.totalorder %s180, %s182
    %p186 = scmp.eq.s32.totalorder %s20, 0
    %p187 = por %p185, %p186
    %p188 = scmp.ne.s32.totalorder %s180, %s182
    %p189 = scmp.eq.s32.totalorder %s25, 3
    %p190 = por %p188, %p189
    %p191 = scmp.ne.s32.totalorder %s182, %s183
    %p192 = scmp.eq.s32.totalorder %s25, 0
    %p193 = por %p191, %p192
    %p194 = scmp.ne.s32.totalorder %s182, %s183
    %p195 = scmp.eq.s32.totalorder %s26, 3
    %p196 = por %p194, %p195
    %p198 = scmp.ne.s32.totalorder %s183, %s197
    %p199 = scmp.eq.s32.totalorder %s26, 0
    %p200 = por %p198, %p199
    %s202 = sadd.s32 %s201, 1
    %p205 = scmp.eq.s32.totalorder %s20, 3
    %p206 = scmp.ne.s32.totalorder %s201, %s203
    %p207 = scmp.eq.s32.totalorder %s20, 0
    %p208 = por %p206, %p207
    %p209 = scmp.ne.s32.totalorder %s201, %s203
    %p210 = scmp.eq.s32.totalorder %s25, 3
    %p211 = por %p209, %p210
    %p212 = scmp.ne.s32.totalorder %s203, %s204
    %p213 = scmp.eq.s32.totalorder %s25, 0
    %p214 = por %p212, %p213
    %p215 = scmp.ne.s32.totalorder %s203, %s204
    %p216 = scmp.eq.s32.totalorder %s26, 3
    %p217 = por %p215, %p216
    %p219 = scmp.ne.s32.totalorder %s204, %s218
    %p220 = scmp.eq.s32.totalorder %s26, 0
    %p221 = por %p219, %p220
    %s223 = sadd.s32 %s222, 1
    %p226 = scmp.eq.s32.totalorder %s20, 3
    %p227 = scmp.ne.s32.totalorder %s222, %s224
    %p228 = scmp.eq.s32.totalorder %s20, 0
    %p229 = por %p227, %p228
    %p230 = scmp.ne.s32.totalorder %s222, %s224
    %p231 = scmp.eq.s32.totalorder %s25, 3
    %p232 = por %p230, %p231
    %p233 = scmp.ne.s32.totalorder %s224, %s225
    %p234 = scmp.eq.s32.totalorder %s25, 0
    %p235 = por %p233, %p234
    %p236 = scmp.ne.s32.totalorder %s224, %s225
    %p237 = scmp.eq.s32.totalorder %s26, 3
    %p238 = por %p236, %p237
    %p240 = scmp.ne.s32.totalorder %s225, %s239
    %p241 = scmp.eq.s32.totalorder %s26, 0
    %p242 = por %p240, %p241
    %s244 = sadd.s32 %s243, 1
    %p247 = scmp.eq.s32.totalorder %s20, 3
    %p248 = scmp.ne.s32.totalorder %s243, %s245
    %p249 = scmp.eq.s32.totalorder %s20, 0
    %p250 = por %p248, %p249
    %p251 = scmp.ne.s32.totalorder %s243, %s245
    %p252 = scmp.eq.s32.totalorder %s25, 3
    %p253 = por %p251, %p252
    %p254 = scmp.ne.s32.totalorder %s245, %s246
    %p255 = scmp.eq.s32.totalorder %s25, 0
    %p256 = por %p254, %p255
    %p257 = scmp.ne.s32.totalorder %s245, %s246
    %p258 = scmp.eq.s32.totalorder %s26, 3
    %p259 = por %p257, %p258
    %p261 = scmp.ne.s32.totalorder %s246, %s260
    %p262 = scmp.eq.s32.totalorder %s26, 0
    %p263 = por %p261, %p262
    %s265 = sadd.s32 %s264, 1
    %p268 = scmp.eq.s32.totalorder %s20, 3
    %p269 = scmp.ne.s32.totalorder %s264, %s266
    %p270 = scmp.eq.s32.totalorder %s20, 0
    %p271 = por %p269, %p270
    %p272 = scmp.ne.s32.totalorder %s264, %s266
    %p273 = scmp.eq.s32.totalorder %s25, 3
    %p274 = por %p272, %p273
    %p275 = scmp.ne.s32.totalorder %s266, %s267
    %p276 = scmp.eq.s32.totalorder %s25, 0
    %p277 = por %p275, %p276
    %p278 = scmp.ne.s32.totalorder %s266, %s267
    %p279 = scmp.eq.s32.totalorder %s26, 3
    %p280 = por %p278, %p279
    %p282 = scmp.ne.s32.totalorder %s267, %s281
    %p283 = scmp.eq.s32.totalorder %s26, 0
    %p284 = por %p282, %p283
    %s286 = sadd.s32 %s285, 1
    %p289 = scmp.eq.s32.totalorder %s20, 3
    %p290 = scmp.ne.s32.totalorder %s285, %s287
    %p291 = scmp.eq.s32.totalorder %s20, 0
    %p292 = por %p290, %p291
    %p293 = scmp.ne.s32.totalorder %s285, %s287
    %p294 = scmp.eq.s32.totalorder %s25, 3
    %p295 = por %p293, %p294
    %p296 = scmp.ne.s32.totalorder %s287, %s288
    %p297 = scmp.eq.s32.totalorder %s25, 0
    %p298 = por %p296, %p297
    %p299 = scmp.ne.s32.totalorder %s287, %s288
    %p300 = scmp.eq.s32.totalorder %s26, 3
    %p301 = por %p299, %p300
    %p303 = scmp.ne.s32.totalorder %s288, %s302
    %p304 = scmp.eq.s32.totalorder %s26, 0
    %p305 = por %p303, %p304
    %s307 = sadd.s32 %s306, 1
    %p310 = scmp.eq.s32.totalorder %s20, 3
    %p311 = scmp.ne.s32.totalorder %s306, %s308
    %p312 = scmp.eq.s32.totalorder %s20, 0
    %p313 = por %p311, %p312
    %p314 = scmp.ne.s32.totalorder %s306, %s308
    %p315 = scmp.eq.s32.totalorder %s25, 3
    %p316 = por %p314, %p315
    %p317 = scmp.ne.s32.totalorder %s308, %s309
    %p318 = scmp.eq.s32.totalorder %s25, 0
    %p319 = por %p317, %p318
    %p320 = scmp.ne.s32.totalorder %s308, %s309
    %p321 = scmp.eq.s32.totalorder %s26, 3
    %p322 = por %p320, %p321
    %p324 = scmp.ne.s32.totalorder %s309, %s323
    %p325 = scmp.eq.s32.totalorder %s26, 0
    %p326 = por %p324, %p325
    %s327 = ssub.s32 %s20, %s27
    %p328 = scmp.eq.s32.totalorder %s327, 0
    %s330 = sadd.s32 %s329, 1
    %s331 = scalar_select %p328, %s329, %s330
    %p334 = pneg %p328
    %p335 = scmp.eq.s32.totalorder %s20, 3
    %p336 = por %p334, %p335
    %p337 = scmp.ne.s32.totalorder %s329, %s332
    %p338 = scmp.eq.s32.totalorder %s20, 0
    %p339 = por %p337, %p338
    %p340 = scmp.ne.s32.totalorder %s329, %s332
    %p341 = scmp.eq.s32.totalorder %s25, 3
    %p342 = por %p340, %p341
    %p343 = scmp.ne.s32.totalorder %s332, %s333
    %p344 = scmp.eq.s32.totalorder %s25, 0
    %p345 = por %p343, %p344
    %p346 = scmp.ne.s32.totalorder %s332, %s333
    %p347 = scmp.eq.s32.totalorder %s26, 3
    %p348 = por %p346, %p347
    %p350 = scmp.ne.s32.totalorder %s333, %s349
    %p351 = scmp.eq.s32.totalorder %s26, 0
    %p352 = por %p350, %p351
    %p353 = scmp.le.s32.totalorder 1, %s20
    %p354 = scmp.lt.s32.totalorder %s20, 5
    %p355 = pnand %p353, %p354
    %p356 = pneg %p355
    // Predicated region
    $region9: #{tpu_custom_call.1} parent=5 // pred_check
      _
    $region10: #{tpu_custom_call.1} parent=5 // pred_check_branch
      %358 = sbr.rel (%p355) target = $region12
    $region11: #{tpu_custom_call.1} parent=5 // pred_region
      %s359 = ssub.s32 %s20, 1
      // Predicated region
      $region13: #{tpu_custom_call.1} parent=11 // pred_check
        %p360 = pneg %p67
      $region14: #{tpu_custom_call.1} parent=11 // pred_check_branch
        %362 = sbr.rel (%p360) target = $region16
      $region15: #{tpu_custom_call.1} parent=11 // pred_region
        _
      $region16: #{tpu_custom_call.1} parent=11 // pred_fallthru
        _
      // Predicated region
      $region17: #{tpu_custom_call.1} parent=11 // pred_check
        %p363 = pneg %p88
      $region18: #{tpu_custom_call.1} parent=11 // pred_check_branch
        %365 = sbr.rel (%p363) target = $region20
      $region19: #{tpu_custom_call.1} parent=11 // pred_region
        _
      $region20: #{tpu_custom_call.1} parent=11 // pred_fallthru
        _
      // Predicated region
      $region21: #{tpu_custom_call.1} parent=11 // pred_check
        %p366 = pneg %p109
      $region22: #{tpu_custom_call.1} parent=11 // pred_check_branch
        %368 = sbr.rel (%p366) target = $region24
      $region23: #{tpu_custom_call.1} parent=11 // pred_region
        _
      $region24: #{tpu_custom_call.1} parent=11 // pred_fallthru
        _
      // Predicated region
      $region25: #{tpu_custom_call.1} parent=11 // pred_check
        %p369 = pneg %p130
      $region26: #{tpu_custom_call.1} parent=11 // pred_check_branch
        %371 = sbr.rel (%p369) target = $region28
      $region27: #{tpu_custom_call.1} parent=11 // pred_region
        _
      $region28: #{tpu_custom_call.1} parent=11 // pred_fallthru
        _
      // Predicated region
      $region29: #{tpu_custom_call.1} parent=11 // pred_check
        %p372 = pneg %p151
      $region30: #{tpu_custom_call.1} parent=11 // pred_check_branch
        %374 = sbr.rel (%p372) target = $region32
      $region31: #{tpu_custom_call.1} parent=11 // pred_region
        _
      $region32: #{tpu_custom_call.1} parent=11 // pred_fallthru
        _
      // Predicated region
      $region33: #{tpu_custom_call.1} parent=11 // pred_check
        %p375 = pneg %p172
      $region34: #{tpu_custom_call.1} parent=11 // pred_check_branch
        %377 = sbr.rel (%p375) target = $region36
      $region35: #{tpu_custom_call.1} parent=11 // pred_region
        _
      $region36: #{tpu_custom_call.1} parent=11 // pred_fallthru
        _
      // Predicated region
      $region37: #{tpu_custom_call.1} parent=11 // pred_check
        %p378 = pneg %p193
      $region38: #{tpu_custom_call.1} parent=11 // pred_check_branch
        %380 = sbr.rel (%p378) target = $region40
      $region39: #{tpu_custom_call.1} parent=11 // pred_region
        _
      $region40: #{tpu_custom_call.1} parent=11 // pred_fallthru
        _
      // Predicated region
      $region41: #{tpu_custom_call.1} parent=11 // pred_check
        %p381 = pneg %p214
      $region42: #{tpu_custom_call.1} parent=11 // pred_check_branch
        %383 = sbr.rel (%p381) target = $region44
      $region43: #{tpu_custom_call.1} parent=11 // pred_region
        _
      $region44: #{tpu_custom_call.1} parent=11 // pred_fallthru
        _
      // Predicated region
      $region45: #{tpu_custom_call.1} parent=11 // pred_check
        %p384 = pneg %p235
      $region46: #{tpu_custom_call.1} parent=11 // pred_check_branch
        %386 = sbr.rel (%p384) target = $region48
      $region47: #{tpu_custom_call.1} parent=11 // pred_region
        _
      $region48: #{tpu_custom_call.1} parent=11 // pred_fallthru
        _
      // Predicated region
      $region49: #{tpu_custom_call.1} parent=11 // pred_check
        %p387 = pneg %p256
      $region50: #{tpu_custom_call.1} parent=11 // pred_check_branch
        %389 = sbr.rel (%p387) target = $region52
      $region51: #{tpu_custom_call.1} parent=11 // pred_region
        _
      $region52: #{tpu_custom_call.1} parent=11 // pred_fallthru
        _
      // Predicated region
      $region53: #{tpu_custom_call.1} parent=11 // pred_check
        %p390 = pneg %p277
      $region54: #{tpu_custom_call.1} parent=11 // pred_check_branch
        %392 = sbr.rel (%p390) target = $region56
      $region55: #{tpu_custom_call.1} parent=11 // pred_region
        _
      $region56: #{tpu_custom_call.1} parent=11 // pred_fallthru
        _
      // Predicated region
      $region57: #{tpu_custom_call.1} parent=11 // pred_check
        %p393 = pneg %p298
      $region58: #{tpu_custom_call.1} parent=11 // pred_check_branch
        %395 = sbr.rel (%p393) target = $region60
      $region59: #{tpu_custom_call.1} parent=11 // pred_region
        _
      $region60: #{tpu_custom_call.1} parent=11 // pred_fallthru
        _
      // Predicated region
      $region61: #{tpu_custom_call.1} parent=11 // pred_check
        %p396 = pneg %p319
      $region62: #{tpu_custom_call.1} parent=11 // pred_check_branch
        %398 = sbr.rel (%p396) target = $region64
      $region63: #{tpu_custom_call.1} parent=11 // pred_region
        _
      $region64: #{tpu_custom_call.1} parent=11 // pred_fallthru
        _
    $region12: #{tpu_custom_call.1} parent=5 // pred_fallthru
      _
    %p399 = scmp.lt.s32.totalorder %s20, 4
    // Predicated region
    $region65: #{tpu_custom_call.1} parent=5 // pred_check
      %p400 = pneg %p399
    $region66: #{tpu_custom_call.1} parent=5 // pred_check_branch
      %402 = sbr.rel (%p400) target = $region68
    $region67: #{tpu_custom_call.1} parent=5 // pred_region
      // Predicated region
      $region69: #{tpu_custom_call.1} parent=67 // pred_check
        %p403 = pneg %p40
      $region70: #{tpu_custom_call.1} parent=67 // pred_check_branch
        %405 = sbr.rel (%p403) target = $region72
      $region71: #{tpu_custom_call.1} parent=67 // pred_region
        %s406 = smul.u32 2, %s20
        %p407 = scmp.lt.s32.totalorder %s406, 7
        %s408 = scalar_select %p407, %s406, 7
        %s409 = smul.addr %s408, 8
        %s410 = smul.addr %s409, 8
        %s411 = scalar_lea.vmem %s0, %s410
        %s412 = smul.u32 2, %s20
      $region72: #{tpu_custom_call.1} parent=67 // pred_fallthru
        _
    $region68: #{tpu_custom_call.1} parent=5 // pred_fallthru
      _
    %p413 = scmp.le.s32.totalorder 1, %s20
    %p414 = scmp.lt.s32.totalorder %s20, 5
    %p415 = pnand %p413, %p414
    %p416 = pneg %p415
    // Predicated region
    $region73: #{tpu_custom_call.1} parent=5 // pred_check
      _
    $region74: #{tpu_custom_call.1} parent=5 // pred_check_branch
      %418 = sbr.rel (%p415) target = $region76
    $region75: #{tpu_custom_call.1} parent=5 // pred_region
      %s419 = ssub.s32 %s20, 1
      %s420 = smul.u32 2, %s25
      %p421 = scmp.lt.s32.totalorder %s420, 7
      %s422 = scalar_select %p421, %s420, 7
      %s423 = smul.addr %s422, 8
      %s424 = smul.addr %s423, 8
      %s425 = scalar_lea.vmem %s0, %s424
      %p426 = pneg %p46
      %p427 = pneg %p43
      %p428 = pneg %p67
      %p429 = pneg %p64
      %p430 = pneg %p88
      %p431 = pneg %p85
      %p432 = pneg %p109
      %p433 = pneg %p106
      %p434 = pneg %p130
      %p435 = pneg %p127
      %p436 = pneg %p151
      %p437 = pneg %p148
      %p438 = pneg %p172
      %p439 = pneg %p169
      %p440 = pneg %p193
      %p441 = pneg %p190
      %p442 = pneg %p214
      %p443 = pneg %p211
      %p444 = pneg %p235
      %p445 = pneg %p232
      %p446 = pneg %p256
      %p447 = pneg %p253
      %p448 = pneg %p277
      %p449 = pneg %p274
      %p450 = pneg %p298
      %p451 = pneg %p295
      %p452 = pneg %p319
      %p453 = pneg %p316
      %p454 = pneg %p345
      %p455 = pneg %p342
      %s456 = smul.u32 2, %s25
      %p457 = scmp.lt.s32.totalorder %s456, 7
      %s458 = scalar_select %p457, %s456, 7
      %s459 = smul.addr %s458, 8
      %s460 = smul.addr %s459, 8
      %s461 = scalar_lea.vmem %s14, %s460
      %s462 = smul.u32 2, %s25
      %p463 = scmp.lt.s32.totalorder %s462, 7
      %s464 = scalar_select %p463, %s462, 7
      %s465 = smul.addr %s464, 8
      %s466 = smul.addr %s465, 8
      %s467 = scalar_lea.vmem %s0, %s466
      %s468 = smul.u32 2, %s25
      %s469 = smul.u32 2, %s25
      %p470 = scmp.lt.s32.totalorder %s469, 7
      %s471 = scalar_select %p470, %s469, 7
      %s472 = smul.addr %s471, 8
      %s473 = smul.addr %s472, 8
      %s474 = scalar_lea.vmem %s14, %s473
      %s475 = smul.u32 2, %s25
      %v476 = vld [vmem:[%s467] sm:$0xff]
      %v477 = vld [vmem:[%s467 + $0x8] sm:$0xff]
      %v478 = vld [vmem:[%s467 + $0x10] sm:$0xff]
      %v479 = vld [vmem:[%s467 + $0x18] sm:$0xff]
      %v480 = vld [vmem:[%s467 + $0x20] sm:$0xff]
      %v481 = vld [vmem:[%s467 + $0x28] sm:$0xff]
      %v482 = vld [vmem:[%s467 + $0x30] sm:$0xff]
      %v483 = vld [vmem:[%s467 + $0x38] sm:$0xff]
      %v484 = vld [vmem:[%s467 + $0x40] sm:$0xff]
      %v485 = vld [vmem:[%s467 + $0x48] sm:$0xff]
      %v486 = vld [vmem:[%s467 + $0x50] sm:$0xff]
      %v487 = vld [vmem:[%s467 + $0x58] sm:$0xff]
      %v488 = vld [vmem:[%s467 + $0x60] sm:$0xff]
      %v489 = vld [vmem:[%s467 + $0x68] sm:$0xff]
      %v490 = vld [vmem:[%s467 + $0x70] sm:$0xff]
      %v491 = vld [vmem:[%s467 + $0x78] sm:$0xff]
      %v492 = vld [vmem:[%s2] sm:$0x1]
      %v493 = vld [vmem:[%s3] sm:$0x1]
      %vm494 = vcmask 261120
      %v495 = vsel %vm494, %v476, 0.0
      %496 = vadd.xlane.f32.xlu0 %v495
      %v497 = vpop.xlane.xlu0 %496
      %v498 = vsel %vm494, %v477, 0.0
      %499 = vadd.xlane.f32.xlu0 %v498
      %v500 = vpop.xlane.xlu0 %499
      %v501 = vsel %vm494, %v478, 0.0
      %502 = vadd.xlane.f32.xlu0 %v501
      %v503 = vpop.xlane.xlu0 %502
      %v504 = vsel %vm494, %v479, 0.0
      %505 = vadd.xlane.f32.xlu0 %v504
      %v506 = vpop.xlane.xlu0 %505
      %v507 = vsel %vm494, %v480, 0.0
      %508 = vadd.xlane.f32.xlu0 %v507
      %v509 = vpop.xlane.xlu0 %508
      %v510 = vsel %vm494, %v481, 0.0
      %511 = vadd.xlane.f32.xlu0 %v510
      %v512 = vpop.xlane.xlu0 %511
      %v513 = vsel %vm494, %v482, 0.0
      %514 = vadd.xlane.f32.xlu0 %v513
      %v515 = vpop.xlane.xlu0 %514
      %v516 = vsel %vm494, %v483, 0.0
      %517 = vadd.xlane.f32.xlu0 %v516
      %v518 = vpop.xlane.xlu0 %517
      %v519 = vsel %vm494, %v484, 0.0
      %520 = vadd.xlane.f32.xlu0 %v519
      %v521 = vpop.xlane.xlu0 %520
      %v522 = vsel %vm494, %v485, 0.0
      %523 = vadd.xlane.f32.xlu0 %v522
      %v524 = vpop.xlane.xlu0 %523
      %v525 = vsel %vm494, %v486, 0.0
      %526 = vadd.xlane.f32.xlu0 %v525
      %v527 = vpop.xlane.xlu0 %526
      %v528 = vsel %vm494, %v487, 0.0
      %529 = vadd.xlane.f32.xlu0 %v528
      %v530 = vpop.xlane.xlu0 %529
      %v531 = vsel %vm494, %v488, 0.0
      %532 = vadd.xlane.f32.xlu0 %v531
      %v533 = vpop.xlane.xlu0 %532
      %v534 = vsel %vm494, %v489, 0.0
      %535 = vadd.xlane.f32.xlu0 %v534
      %v536 = vpop.xlane.xlu0 %535
      %v537 = vsel %vm494, %v490, 0.0
      %538 = vadd.xlane.f32.xlu0 %v537
      %v539 = vpop.xlane.xlu0 %538
      %v540 = vsel %vm494, %v491, 0.0
      %541 = vadd.xlane.f32.xlu0 %v540
      %v542 = vpop.xlane.xlu0 %541
      %v543 = vrcp.pop 32.0
      %v544 = vmul.f32 %v497, %v543
      %v545 = vmul.f32 %v500, %v543
      %v546 = vmul.f32 %v503, %v543
      %v547 = vmul.f32 %v506, %v543
      %v548 = vmul.f32 %v509, %v543
      %v549 = vmul.f32 %v512, %v543
      %v550 = vmul.f32 %v515, %v543
      %v551 = vmul.f32 %v518, %v543
      %v552 = vmul.f32 %v521, %v543
      %v553 = vmul.f32 %v524, %v543
      %v554 = vmul.f32 %v527, %v543
      %v555 = vmul.f32 %v530, %v543
      %v556 = vmul.f32 %v533, %v543
      %v557 = vmul.f32 %v536, %v543
      %v558 = vmul.f32 %v539, %v543
      %v559 = vmul.f32 %v542, %v543
      %v560 = vsub.f32 %v476, %v544
      %v561 = vsub.f32 %v477, %v545
      %v562 = vsub.f32 %v478, %v546
      %v563 = vsub.f32 %v479, %v547
      %v564 = vsub.f32 %v480, %v548
      %v565 = vsub.f32 %v481, %v549
      %v566 = vsub.f32 %v482, %v550
      %v567 = vsub.f32 %v483, %v551
      %v568 = vsub.f32 %v484, %v552
      %v569 = vsub.f32 %v485, %v553
      %v570 = vsub.f32 %v486, %v554
      %v571 = vsub.f32 %v487, %v555
      %v572 = vsub.f32 %v488, %v556
      %v573 = vsub.f32 %v489, %v557
      %v574 = vsub.f32 %v490, %v558
      %v575 = vsub.f32 %v491, %v559
      %v576 = vmul.f32 %v560, %v560
      %v577 = vmul.f32 %v561, %v561
      %v578 = vmul.f32 %v562, %v562
      %v579 = vmul.f32 %v563, %v563
      %v580 = vmul.f32 %v564, %v564
      %v581 = vmul.f32 %v565, %v565
      %v582 = vmul.f32 %v566, %v566
      %v583 = vmul.f32 %v567, %v567
      %v584 = vmul.f32 %v568, %v568
      %v585 = vmul.f32 %v569, %v569
      %v586 = vmul.f32 %v570, %v570
      %v587 = vmul.f32 %v571, %v571
      %v588 = vmul.f32 %v572, %v572
      %v589 = vmul.f32 %v573, %v573
      %v590 = vmul.f32 %v574, %v574
      %v591 = vmul.f32 %v575, %v575
      %v592 = vsel %vm494, %v576, 0.0
      %593 = vadd.xlane.f32.xlu0 %v592
      %v594 = vpop.xlane.xlu0 %593
      %v595 = vsel %vm494, %v577, 0.0
      %596 = vadd.xlane.f32.xlu0 %v595
      %v597 = vpop.xlane.xlu0 %596
      %v598 = vsel %vm494, %v578, 0.0
      %599 = vadd.xlane.f32.xlu0 %v598
      %v600 = vpop.xlane.xlu0 %599
      %v601 = vsel %vm494, %v579, 0.0
      %602 = vadd.xlane.f32.xlu0 %v601
      %v603 = vpop.xlane.xlu0 %602
      %v604 = vsel %vm494, %v580, 0.0
      %605 = vadd.xlane.f32.xlu0 %v604
      %v606 = vpop.xlane.xlu0 %605
      %v607 = vsel %vm494, %v581, 0.0
      %608 = vadd.xlane.f32.xlu0 %v607
      %v609 = vpop.xlane.xlu0 %608
      %v610 = vsel %vm494, %v582, 0.0
      %611 = vadd.xlane.f32.xlu0 %v610
      %v612 = vpop.xlane.xlu0 %611
      %v613 = vsel %vm494, %v583, 0.0
      %614 = vadd.xlane.f32.xlu0 %v613
      %v615 = vpop.xlane.xlu0 %614
      %v616 = vsel %vm494, %v584, 0.0
      %617 = vadd.xlane.f32.xlu0 %v616
      %v618 = vpop.xlane.xlu0 %617
      %v619 = vsel %vm494, %v585, 0.0
      %620 = vadd.xlane.f32.xlu0 %v619
      %v621 = vpop.xlane.xlu0 %620
      %v622 = vsel %vm494, %v586, 0.0
      %623 = vadd.xlane.f32.xlu0 %v622
      %v624 = vpop.xlane.xlu0 %623
      %v625 = vsel %vm494, %v587, 0.0
      %626 = vadd.xlane.f32.xlu0 %v625
      %v627 = vpop.xlane.xlu0 %626
      %v628 = vsel %vm494, %v588, 0.0
      %629 = vadd.xlane.f32.xlu0 %v628
      %v630 = vpop.xlane.xlu0 %629
      %v631 = vsel %vm494, %v589, 0.0
      %632 = vadd.xlane.f32.xlu0 %v631
      %v633 = vpop.xlane.xlu0 %632
      %v634 = vsel %vm494, %v590, 0.0
      %635 = vadd.xlane.f32.xlu0 %v634
      %v636 = vpop.xlane.xlu0 %635
      %v637 = vsel %vm494, %v591, 0.0
      %638 = vadd.xlane.f32.xlu0 %v637
      %v639 = vpop.xlane.xlu0 %638
      %v640 = vmul.f32 %v594, %v543
      %v641 = vmul.f32 %v597, %v543
      %v642 = vmul.f32 %v600, %v543
      %v643 = vmul.f32 %v603, %v543
      %v644 = vmul.f32 %v606, %v543
      %v645 = vmul.f32 %v609, %v543
      %v646 = vmul.f32 %v612, %v543
      %v647 = vmul.f32 %v615, %v543
      %v648 = vmul.f32 %v618, %v543
      %v649 = vmul.f32 %v621, %v543
      %v650 = vmul.f32 %v624, %v543
      %v651 = vmul.f32 %v627, %v543
      %v652 = vmul.f32 %v630, %v543
      %v653 = vmul.f32 %v633, %v543
      %v654 = vmul.f32 %v636, %v543
      %v655 = vmul.f32 %v639, %v543
      %v656 = vadd.f32 %v640, 1e-05
      %v657 = vadd.f32 %v641, 1e-05
      %v658 = vadd.f32 %v642, 1e-05
      %v659 = vadd.f32 %v643, 1e-05
      %v660 = vadd.f32 %v644, 1e-05
      %v661 = vadd.f32 %v645, 1e-05
      %v662 = vadd.f32 %v646, 1e-05
      %v663 = vadd.f32 %v647, 1e-05
      %v664 = vadd.f32 %v648, 1e-05
      %v665 = vadd.f32 %v649, 1e-05
      %v666 = vadd.f32 %v650, 1e-05
      %v667 = vadd.f32 %v651, 1e-05
      %v668 = vadd.f32 %v652, 1e-05
      %v669 = vadd.f32 %v653, 1e-05
      %v670 = vadd.f32 %v654, 1e-05
      %v671 = vadd.f32 %v655, 1e-05
      %v672 = vrsqrt.pop %v656
      %v673 = vrsqrt.pop %v657
      %v674 = vrsqrt.pop %v658
      %v675 = vrsqrt.pop %v659
      %v676 = vrsqrt.pop %v660
      %v677 = vrsqrt.pop %v661
      %v678 = vrsqrt.pop %v662
      %v679 = vrsqrt.pop %v663
      %v680 = vrsqrt.pop %v664
      %v681 = vrsqrt.pop %v665
      %v682 = vrsqrt.pop %v666
      %v683 = vrsqrt.pop %v667
      %v684 = vrsqrt.pop %v668
      %v685 = vrsqrt.pop %v669
      %v686 = vrsqrt.pop %v670
      %v687 = vrsqrt.pop %v671
      %v688 = vmul.f32 %v560, %v672
      %v689 = vmul.f32 %v561, %v673
      %v690 = vmul.f32 %v562, %v674
      %v691 = vmul.f32 %v563, %v675
      %v692 = vmul.f32 %v564, %v676
      %v693 = vmul.f32 %v565, %v677
      %v694 = vmul.f32 %v566, %v678
      %v695 = vmul.f32 %v567, %v679
      %v696 = vmul.f32 %v568, %v680
      %v697 = vmul.f32 %v569, %v681
      %v698 = vmul.f32 %v570, %v682
      %v699 = vmul.f32 %v571, %v683
      %v700 = vmul.f32 %v572, %v684
      %v701 = vmul.f32 %v573, %v685
      %v702 = vmul.f32 %v574, %v686
      %v703 = vmul.f32 %v575, %v687
      %v705 = vlaneseq
      %v706 = vshrl.u32 %v705, 7
      %v707 = vsub.s32 0, %v706
      %v708 = vrot.slane %v492, %v707
      %v710 = vmul.f32 %v688, %v708
      %v711 = vmul.f32 %v689, %v708
      %v712 = vmul.f32 %v690, %v708
      %v713 = vmul.f32 %v691, %v708
      %v714 = vmul.f32 %v692, %v708
      %v715 = vmul.f32 %v693, %v708
      %v716 = vmul.f32 %v694, %v708
      %v717 = vmul.f32 %v695, %v708
      %v718 = vmul.f32 %v696, %v708
      %v719 = vmul.f32 %v697, %v708
      %v720 = vmul.f32 %v698, %v708
      %v721 = vmul.f32 %v699, %v708
      %v722 = vmul.f32 %v700, %v708
      %v723 = vmul.f32 %v701, %v708
      %v724 = vmul.f32 %v702, %v708
      %v725 = vmul.f32 %v703, %v708
      %v727 = vlaneseq
      %v728 = vshrl.u32 %v727, 7
      %v729 = vsub.s32 0, %v728
      %v730 = vrot.slane %v493, %v729
      %v732 = vadd.f32 %v710, %v730
      %v733 = vadd.f32 %v711, %v730
      %v734 = vadd.f32 %v712, %v730
      %v735 = vadd.f32 %v713, %v730
      %v736 = vadd.f32 %v714, %v730
      %v737 = vadd.f32 %v715, %v730
      %v738 = vadd.f32 %v716, %v730
      %v739 = vadd.f32 %v717, %v730
      %v740 = vadd.f32 %v718, %v730
      %v741 = vadd.f32 %v719, %v730
      %v742 = vadd.f32 %v720, %v730
      %v743 = vadd.f32 %v721, %v730
      %v744 = vadd.f32 %v722, %v730
      %v745 = vadd.f32 %v723, %v730
      %v746 = vadd.f32 %v724, %v730
      %v747 = vadd.f32 %v725, %v730
      %v748 = vld [vmem:[%s4] sm:$0xff]
      %v749 = vld [vmem:[%s4 + $0x8] sm:$0xff]
      %v750 = vld [vmem:[%s4 + $0x10] sm:$0xff]
      %v751 = vld [vmem:[%s4 + $0x18] sm:$0xff]
      %v752 = vld [vmem:[%s5] sm:$0x1]
      %v754 = vlaneseq
      %v755 = vshrl.u32 %v754, 7
      %v756 = vsub.s32 0, %v755
      %v757 = vrot.slane %v752, %v756
      %v760 = vsel %vm494, %v732, 0
      %v763 = vsel %vm494, %v733, 0
      %v766 = vsel %vm494, %v734, 0
      %v769 = vsel %vm494, %v735, 0
      %v772 = vsel %vm494, %v736, 0
      %v775 = vsel %vm494, %v737, 0
      %v778 = vsel %vm494, %v738, 0
      %v781 = vsel %vm494, %v739, 0
      %v784 = vsel %vm494, %v740, 0
      %v787 = vsel %vm494, %v741, 0
      %v790 = vsel %vm494, %v742, 0
      %v793 = vsel %vm494, %v743, 0
      %v796 = vsel %vm494, %v744, 0
      %v799 = vsel %vm494, %v745, 0
      %v802 = vsel %vm494, %v746, 0
      %v805 = vsel %vm494, %v747, 0
      %807 = vmatprep.subr.mxu0 0.0
      %808 = vmatpush1.msra.mxu0 %v748
      %809 = vmatprep.subr.mxu0 0.0
      %810 = vmatpush1.msra.mxu0 %v749
      %811 = vmatprep.subr.mxu0 0.0
      %812 = vmatpush1.msra.mxu0 %v750
      %813 = vmatprep.subr.mxu0 0.0
      %814 = vmatpush1.msra.mxu0 %v751
      %815 = vmatprep.subr.mxu0 0.0
      %816 = vmatpush1.msra.mxu0 0.0
      %817 = vmatprep.subr.mxu0 0.0
      %818 = vmatpush1.msra.mxu0 0.0
      %819 = vmatprep.subr.mxu0 0.0
      %820 = vmatpush1.msra.mxu0 0.0
      %821 = vmatprep.subr.mxu0 0.0
      %822 = vmatpush1.msra.mxu0 0.0
      %823 = vmatprep.subr.mxu0 0.0
      %824 = vmatpush1.msra.mxu0 0.0
      %825 = vmatprep.subr.mxu0 0.0
      %826 = vmatpush1.msra.mxu0 0.0
      %827 = vmatprep.subr.mxu0 0.0
      %828 = vmatpush1.msra.mxu0 0.0
      %829 = vmatprep.subr.mxu0 0.0
      %830 = vmatpush1.msra.mxu0 0.0
      %831 = vmatprep.subr.mxu0 0.0
      %832 = vmatpush1.msra.mxu0 0.0
      %833 = vmatprep.subr.mxu0 0.0
      %834 = vmatpush1.msra.mxu0 0.0
      %835 = vmatprep.subr.mxu0 0.0
      %836 = vmatpush1.msra.mxu0 0.0
      %837 = vmatprep.subr.mxu0 0.0
      %838 = vmatpush1.msra.mxu0 0.0
      %839 = vmatprep.subr.mxu0 0.0
      %840 = vmatpush1.msra.mxu0 0.0
      %841 = vmatprep.subr.mxu0 0.0
      %842 = vmatpush1.msra.mxu0 0.0
      %843 = vmatprep.subr.mxu0 0.0
      %844 = vmatpush1.msra.mxu0 0.0
      %845 = vmatprep.subr.mxu0 0.0
      %846 = vmatpush1.msra.mxu0 0.0
      %847 = vmatprep.subr.mxu0 0.0
      %848 = vmatpush1.msra.mxu0 0.0
      %849 = vmatprep.subr.mxu0 0.0
      %850 = vmatpush1.msra.mxu0 0.0
      %851 = vmatprep.subr.mxu0 0.0
      %852 = vmatpush1.msra.mxu0 0.0
      %853 = vmatprep.subr.mxu0 0.0
      %854 = vmatpush1.msra.mxu0 0.0
      %855 = vmatprep.subr.mxu0 0.0
      %856 = vmatpush1.msra.mxu0 0.0
      %857 = vmatprep.subr.mxu0 0.0
      %858 = vmatpush1.msra.mxu0 0.0
      %859 = vmatprep.subr.mxu0 0.0
      %860 = vmatpush1.msra.mxu0 0.0
      %861 = vmatprep.subr.mxu0 0.0
      %862 = vmatpush1.msra.mxu0 0.0
      %863 = vmatprep.subr.mxu0 0.0
      %864 = vmatpush1.msra.mxu0 0.0
      %865 = vmatprep.subr.mxu0 0.0
      %866 = vmatpush1.msra.mxu0 0.0
      %867 = vmatprep.subr.mxu0 0.0
      %868 = vmatpush1.msra.mxu0 0.0
      %869 = vmatprep.subr.mxu0 0.0
      %870 = vmatpush1.msra.mxu0 0.0
      %871 = vmatprep.mubr.f32.mxu0 0.0
      %872 = vmatmul.mubr.f32.gmra.mrb[0].mxu0 %v760
      %v873 = vpop.f32.mrb[0].mxu0
      %v874 = vadd.f32 %v757, %v873
      %v875 = vpop.f32.mrb[0].mxu0
      %876 = vmatprep.mubr.f32.mxu0 0.0
      %877 = vmatmul.mubr.f32.gmra.mrb[0].mxu0 %v763
      %v878 = vpop.f32.mrb[0].mxu0
      %v879 = vadd.f32 %v757, %v878
      %v880 = vpop.f32.mrb[0].mxu0
      %881 = vmatprep.mubr.f32.mxu0 0.0
      %882 = vmatmul.mubr.f32.gmra.mrb[0].mxu0 %v766
      %v883 = vpop.f32.mrb[0].mxu0
      %v884 = vadd.f32 %v757, %v883
      %v885 = vpop.f32.mrb[0].mxu0
      %886 = vmatprep.mubr.f32.mxu0 0.0
      %887 = vmatmul.mubr.f32.gmra.mrb[0].mxu0 %v769
      %v888 = vpop.f32.mrb[0].mxu0
      %v889 = vadd.f32 %v757, %v888
      %v890 = vpop.f32.mrb[0].mxu0
      %891 = vmatprep.mubr.f32.mxu0 0.0
      %892 = vmatmul.mubr.f32.gmra.mrb[0].mxu0 %v772
      %v893 = vpop.f32.mrb[0].mxu0
      %v894 = vadd.f32 %v757, %v893
      %v895 = vpop.f32.mrb[0].mxu0
      %896 = vmatprep.mubr.f32.mxu0 0.0
      %897 = vmatmul.mubr.f32.gmra.mrb[0].mxu0 %v775
      %v898 = vpop.f32.mrb[0].mxu0
      %v899 = vadd.f32 %v757, %v898
      %v900 = vpop.f32.mrb[0].mxu0
      %901 = vmatprep.mubr.f32.mxu0 0.0
      %902 = vmatmul.mubr.f32.gmra.mrb[0].mxu0 %v778
      %v903 = vpop.f32.mrb[0].mxu0
      %v904 = vadd.f32 %v757, %v903
      %v905 = vpop.f32.mrb[0].mxu0
      %906 = vmatprep.mubr.f32.mxu0 0.0
      %907 = vmatmul.mubr.f32.gmra.mrb[0].mxu0 %v781
      %v908 = vpop.f32.mrb[0].mxu0
      %v909 = vadd.f32 %v757, %v908
      %v910 = vpop.f32.mrb[0].mxu0
      %911 = vmatprep.mubr.f32.mxu0 0.0
      %912 = vmatmul.mubr.f32.gmra.mrb[0].mxu0 %v784
      %v913 = vpop.f32.mrb[0].mxu0
      %v914 = vadd.f32 %v757, %v913
      %v915 = vpop.f32.mrb[0].mxu0
      %916 = vmatprep.mubr.f32.mxu0 0.0
      %917 = vmatmul.mubr.f32.gmra.mrb[0].mxu0 %v787
      %v918 = vpop.f32.mrb[0].mxu0
      %v919 = vadd.f32 %v757, %v918
      %v920 = vpop.f32.mrb[0].mxu0
      %921 = vmatprep.mubr.f32.mxu0 0.0
      %922 = vmatmul.mubr.f32.gmra.mrb[0].mxu0 %v790
      %v923 = vpop.f32.mrb[0].mxu0
      %v924 = vadd.f32 %v757, %v923
      %v925 = vpop.f32.mrb[0].mxu0
      %926 = vmatprep.mubr.f32.mxu0 0.0
      %927 = vmatmul.mubr.f32.gmra.mrb[0].mxu0 %v793
      %v928 = vpop.f32.mrb[0].mxu0
      %v929 = vadd.f32 %v757, %v928
      %v930 = vpop.f32.mrb[0].mxu0
      %931 = vmatprep.mubr.f32.mxu0 0.0
      %932 = vmatmul.mubr.f32.gmra.mrb[0].mxu0 %v796
      %v933 = vpop.f32.mrb[0].mxu0
      %v934 = vadd.f32 %v757, %v933
      %v935 = vpop.f32.mrb[0].mxu0
      %936 = vmatprep.mubr.f32.mxu0 0.0
      %937 = vmatmul.mubr.f32.gmra.mrb[0].mxu0 %v799
      %v938 = vpop.f32.mrb[0].mxu0
      %v939 = vadd.f32 %v757, %v938
      %v940 = vpop.f32.mrb[0].mxu0
      %941 = vmatprep.mubr.f32.mxu0 0.0
      %942 = vmatmul.mubr.f32.gmra.mrb[0].mxu0 %v802
      %v943 = vpop.f32.mrb[0].mxu0
      %v944 = vadd.f32 %v757, %v943
      %v945 = vpop.f32.mrb[0].mxu0
      %946 = vmatprep.mubr.f32.mxu0 0.0
      %947 = vmatmul.mubr.f32.gmra.mrb[0].mxu0 %v805
      %v948 = vpop.f32.mrb[0].mxu0
      %v949 = vadd.f32 %v757, %v948
      %v950 = vpop.f32.mrb[0].mxu0
      %951 = vdwg.mxu0
      %952 = vxpose.xlu0.b32.start [1/16] %v874, 128
      %953 = vxpose.xlu0.b32.cont [2/16] %v879, 128
      %954 = vxpose.xlu0.b32.cont [3/16] %v884, 128
      %955 = vxpose.xlu0.b32.cont [4/16] %v889, 128
      %956 = vxpose.xlu0.b32.cont [5/16] %v894, 128
      %957 = vxpose.xlu0.b32.cont [6/16] %v899, 128
      %958 = vxpose.xlu0.b32.cont [7/16] %v904, 128
      %959 = vxpose.xlu0.b32.cont [8/16] %v909, 128
      %960 = vxpose.xlu0.b32.cont [9/16] 0.0, 128
      %961 = vxpose.xlu0.b32.cont [10/16] 0.0, 128
      %962 = vxpose.xlu0.b32.cont [11/16] 0.0, 128
      %963 = vxpose.xlu0.b32.cont [12/16] 0.0, 128
      %964 = vxpose.xlu0.b32.cont [13/16] 0.0, 128
      %965 = vxpose.xlu0.b32.cont [14/16] 0.0, 128
      %966 = vxpose.xlu0.b32.cont [15/16] 0.0, 128
      %967 = vxpose.xlu0.b32.end [16/16] 0.0, 128
      %v968 = vpop.trf.xlu0
      %v969 = vpop.trf.xlu0
      %v970 = vpop.trf.xlu0
      %v971 = vpop.trf.xlu0
      %v972 = vpop.trf.xlu0
      %v973 = vpop.trf.xlu0
      %v974 = vpop.trf.xlu0
      %v975 = vpop.trf.xlu0
      %v976 = vpop.trf.xlu0
      %v977 = vpop.trf.xlu0
      %v978 = vpop.trf.xlu0
      %v979 = vpop.trf.xlu0
      %v980 = vpop.trf.xlu0
      %v981 = vpop.trf.xlu0
      %v982 = vpop.trf.xlu0
      %v983 = vpop.trf.xlu0
      %984 = vxpose.xlu0.b32.start [1/16] %v914, 128
      %985 = vxpose.xlu0.b32.cont [2/16] %v919, 128
      %986 = vxpose.xlu0.b32.cont [3/16] %v924, 128
      %987 = vxpose.xlu0.b32.cont [4/16] %v929, 128
      %988 = vxpose.xlu0.b32.cont [5/16] %v934, 128
      %989 = vxpose.xlu0.b32.cont [6/16] %v939, 128
      %990 = vxpose.xlu0.b32.cont [7/16] %v944, 128
      %991 = vxpose.xlu0.b32.cont [8/16] %v949, 128
      %992 = vxpose.xlu0.b32.cont [9/16] 0.0, 128
      %993 = vxpose.xlu0.b32.cont [10/16] 0.0, 128
      %994 = vxpose.xlu0.b32.cont [11/16] 0.0, 128
      %995 = vxpose.xlu0.b32.cont [12/16] 0.0, 128
      %996 = vxpose.xlu0.b32.cont [13/16] 0.0, 128
      %997 = vxpose.xlu0.b32.cont [14/16] 0.0, 128
      %998 = vxpose.xlu0.b32.cont [15/16] 0.0, 128
      %999 = vxpose.xlu0.b32.end [16/16] 0.0, 128
      %v1000 = vpop.trf.xlu0
      %v1001 = vpop.trf.xlu0
      %v1002 = vpop.trf.xlu0
      %v1003 = vpop.trf.xlu0
      %v1004 = vpop.trf.xlu0
      %v1005 = vpop.trf.xlu0
      %v1006 = vpop.trf.xlu0
      %v1007 = vpop.trf.xlu0
      %v1008 = vpop.trf.xlu0
      %v1009 = vpop.trf.xlu0
      %v1010 = vpop.trf.xlu0
      %v1011 = vpop.trf.xlu0
      %v1012 = vpop.trf.xlu0
      %v1013 = vpop.trf.xlu0
      %v1014 = vpop.trf.xlu0
      %v1015 = vpop.trf.xlu0
      %v1016 = vld [vmem:[%s1] sm:$0xff]
      %v1017 = vld [vmem:[%s1 + $0x8] sm:$0xff]
      %v1018 = vld [vmem:[%s1 + $0x10] sm:$0xff]
      %v1019 = vld [vmem:[%s1 + $0x18] sm:$0xff]
      %1028 = vrot.lane.b32.xlu0 %v874, 96
      %v1029 = vpop.permute.xlu0 %1028
      %1030 = vrot.lane.b32.xlu0 %v879, 96
      %v1031 = vpop.permute.xlu0 %1030
      %1032 = vrot.lane.b32.xlu0 %v884, 96
      %v1033 = vpop.permute.xlu0 %1032
      %1034 = vrot.lane.b32.xlu0 %v889, 96
      %v1035 = vpop.permute.xlu0 %1034
      %1036 = vrot.lane.b32.xlu0 %v894, 96
      %v1037 = vpop.permute.xlu0 %1036
      %1038 = vrot.lane.b32.xlu0 %v899, 96
      %v1039 = vpop.permute.xlu0 %1038
      %1040 = vrot.lane.b32.xlu0 %v904, 96
      %v1041 = vpop.permute.xlu0 %1040
      %1042 = vrot.lane.b32.xlu0 %v909, 96
      %v1043 = vpop.permute.xlu0 %1042
      %vm1052 = vcmask 523264
      %v1054 = vsel %vm1052, %v968, 0
      %v1057 = vsel %vm1052, %v969, 0
      %v1060 = vsel %vm1052, %v970, 0
      %v1063 = vsel %vm1052, %v971, 0
      %1065 = vmatprep.subr.mxu0 0.0
      %1066 = vmatpush1.msra.mxu0 %v1029
      %1067 = vmatprep.subr.mxu0 0.0
      %1068 = vmatpush1.msra.mxu0 %v1031
      %1069 = vmatprep.subr.mxu0 0.0
      %1070 = vmatpush1.msra.mxu0 %v1033
      %1071 = vmatprep.subr.mxu0 0.0
      %1072 = vmatpush1.msra.mxu0 %v1035
      %1073 = vmatprep.subr.mxu0 0.0
      %1074 = vmatpush1.msra.mxu0 %v1037
      %1075 = vmatprep.subr.mxu0 0.0
      %1076 = vmatpush1.msra.mxu0 %v1039
      %1077 = vmatprep.subr.mxu0 0.0
      %1078 = vmatpush1.msra.mxu0 %v1041
      %1079 = vmatprep.subr.mxu0 0.0
      %1080 = vmatpush1.msra.mxu0 %v1043
      %1081 = vmatprep.subr.mxu0 0.0
      %1082 = vmatpush1.msra.mxu0 0.0
      %1083 = vmatprep.subr.mxu0 0.0
      %1084 = vmatpush1.msra.mxu0 0.0
      %1085 = vmatprep.subr.mxu0 0.0
      %1086 = vmatpush1.msra.mxu0 0.0
      %1087 = vmatprep.subr.mxu0 0.0
      %1088 = vmatpush1.msra.mxu0 0.0
      %1089 = vmatprep.subr.mxu0 0.0
      %1090 = vmatpush1.msra.mxu0 0.0
      %1091 = vmatprep.subr.mxu0 0.0
      %1092 = vmatpush1.msra.mxu0 0.0
      %1093 = vmatprep.subr.mxu0 0.0
      %1094 = vmatpush1.msra.mxu0 0.0
      %1095 = vmatprep.subr.mxu0 0.0
      %1096 = vmatpush1.msra.mxu0 0.0
      %1097 = vmatprep.subr.mxu0 0.0
      %1098 = vmatpush1.msra.mxu0 0.0
      %1099 = vmatprep.subr.mxu0 0.0
      %1100 = vmatpush1.msra.mxu0 0.0
      %1101 = vmatprep.subr.mxu0 0.0
      %1102 = vmatpush1.msra.mxu0 0.0
      %1103 = vmatprep.subr.mxu0 0.0
      %1104 = vmatpush1.msra.mxu0 0.0
      %1105 = vmatprep.subr.mxu0 0.0
      %1106 = vmatpush1.msra.mxu0 0.0
      %1107 = vmatprep.subr.mxu0 0.0
      %1108 = vmatpush1.msra.mxu0 0.0
      %1109 = vmatprep.subr.mxu0 0.0
      %1110 = vmatpush1.msra.mxu0 0.0
      %1111 = vmatprep.subr.mxu0 0.0
      %1112 = vmatpush1.msra.mxu0 0.0
      %1113 = vmatprep.subr.mxu0 0.0
      %1114 = vmatpush1.msra.mxu0 0.0
      %1115 = vmatprep.subr.mxu0 0.0
      %1116 = vmatpush1.msra.mxu0 0.0
      %1117 = vmatprep.subr.mxu0 0.0
      %1118 = vmatpush1.msra.mxu0 0.0
      %1119 = vmatprep.subr.mxu0 0.0
      %1120 = vmatpush1.msra.mxu0 0.0
      %1121 = vmatprep.subr.mxu0 0.0
      %1122 = vmatpush1.msra.mxu0 0.0
      %1123 = vmatprep.subr.mxu0 0.0
      %1124 = vmatpush1.msra.mxu0 0.0
      %1125 = vmatprep.subr.mxu0 0.0
      %1126 = vmatpush1.msra.mxu0 0.0
      %1127 = vmatprep.subr.mxu0 0.0
      %1128 = vmatpush1.msra.mxu0 0.0
      %1129 = vmatprep.mubr.f32.mxu0 0.0
      %1130 = vmatmul.mubr.f32.gmra.mrb[0].mxu0 %v1054
      %v1131 = vpop.f32.mrb[0].mxu0
      %v1132 = vadd.f32 %v1016, %v1131
      %v1133 = vpop.f32.mrb[0].mxu0
      %1134 = vmatprep.mubr.f32.mxu0 0.0
      %1135 = vmatmul.mubr.f32.gmra.mrb[0].mxu0 %v1057
      %v1136 = vpop.f32.mrb[0].mxu0
      %v1137 = vadd.f32 %v1017, %v1136
      %v1138 = vpop.f32.mrb[0].mxu0
      %1139 = vmatprep.mubr.f32.mxu0 0.0
      %1140 = vmatmul.mubr.f32.gmra.mrb[0].mxu0 %v1060
      %v1141 = vpop.f32.mrb[0].mxu0
      %v1142 = vadd.f32 %v1018, %v1141
      %v1143 = vpop.f32.mrb[0].mxu0
      %1144 = vmatprep.mubr.f32.mxu0 0.0
      %1145 = vmatmul.mubr.f32.gmra.mrb[0].mxu0 %v1063
      %v1146 = vpop.f32.mrb[0].mxu0
      %v1147 = vadd.f32 %v1019, %v1146
      %v1148 = vpop.f32.mrb[0].mxu0
      %1149 = vdwg.mxu0
      %1158 = vrot.lane.b32.xlu0 %v914, 96
      %v1159 = vpop.permute.xlu0 %1158
      %1160 = vrot.lane.b32.xlu0 %v919, 96
      %v1161 = vpop.permute.xlu0 %1160
      %1162 = vrot.lane.b32.xlu0 %v924, 96
      %v1163 = vpop.permute.xlu0 %1162
      %1164 = vrot.lane.b32.xlu0 %v929, 96
      %v1165 = vpop.permute.xlu0 %1164
      %1166 = vrot.lane.b32.xlu0 %v934, 96
      %v1167 = vpop.permute.xlu0 %1166
      %1168 = vrot.lane.b32.xlu0 %v939, 96
      %v1169 = vpop.permute.xlu0 %1168
      %1170 = vrot.lane.b32.xlu0 %v944, 96
      %v1171 = vpop.permute.xlu0 %1170
      %1172 = vrot.lane.b32.xlu0 %v949, 96
      %v1173 = vpop.permute.xlu0 %1172
      %v1183 = vsel %vm1052, %v1000, 0
      %v1186 = vsel %vm1052, %v1001, 0
      %v1189 = vsel %vm1052, %v1002, 0
      %v1192 = vsel %vm1052, %v1003, 0
      %1194 = vmatprep.subr.mxu0 0.0
      %1195 = vmatpush1.msra.mxu0 %v1159
      %1196 = vmatprep.subr.mxu0 0.0
      %1197 = vmatpush1.msra.mxu0 %v1161
      %1198 = vmatprep.subr.mxu0 0.0
      %1199 = vmatpush1.msra.mxu0 %v1163
      %1200 = vmatprep.subr.mxu0 0.0
      %1201 = vmatpush1.msra.mxu0 %v1165
      %1202 = vmatprep.subr.mxu0 0.0
      %1203 = vmatpush1.msra.mxu0 %v1167
      %1204 = vmatprep.subr.mxu0 0.0
      %1205 = vmatpush1.msra.mxu0 %v1169
      %1206 = vmatprep.subr.mxu0 0.0
      %1207 = vmatpush1.msra.mxu0 %v1171
      %1208 = vmatprep.subr.mxu0 0.0
      %1209 = vmatpush1.msra.mxu0 %v1173
      %1210 = vmatprep.subr.mxu0 0.0
      %1211 = vmatpush1.msra.mxu0 0.0
      %1212 = vmatprep.subr.mxu0 0.0
      %1213 = vmatpush1.msra.mxu0 0.0
      %1214 = vmatprep.subr.mxu0 0.0
      %1215 = vmatpush1.msra.mxu0 0.0
      %1216 = vmatprep.subr.mxu0 0.0
      %1217 = vmatpush1.msra.mxu0 0.0
      %1218 = vmatprep.subr.mxu0 0.0
      %1219 = vmatpush1.msra.mxu0 0.0
      %1220 = vmatprep.subr.mxu0 0.0
      %1221 = vmatpush1.msra.mxu0 0.0
      %1222 = vmatprep.subr.mxu0 0.0
      %1223 = vmatpush1.msra.mxu0 0.0
      %1224 = vmatprep.subr.mxu0 0.0
      %1225 = vmatpush1.msra.mxu0 0.0
      %1226 = vmatprep.subr.mxu0 0.0
      %1227 = vmatpush1.msra.mxu0 0.0
      %1228 = vmatprep.subr.mxu0 0.0
      %1229 = vmatpush1.msra.mxu0 0.0
      %1230 = vmatprep.subr.mxu0 0.0
      %1231 = vmatpush1.msra.mxu0 0.0
      %1232 = vmatprep.subr.mxu0 0.0
      %1233 = vmatpush1.msra.mxu0 0.0
      %1234 = vmatprep.subr.mxu0 0.0
      %1235 = vmatpush1.msra.mxu0 0.0
      %1236 = vmatprep.subr.mxu0 0.0
      %1237 = vmatpush1.msra.mxu0 0.0
      %1238 = vmatprep.subr.mxu0 0.0
      %1239 = vmatpush1.msra.mxu0 0.0
      %1240 = vmatprep.subr.mxu0 0.0
      %1241 = vmatpush1.msra.mxu0 0.0
      %1242 = vmatprep.subr.mxu0 0.0
      %1243 = vmatpush1.msra.mxu0 0.0
      %1244 = vmatprep.subr.mxu0 0.0
      %1245 = vmatpush1.msra.mxu0 0.0
      %1246 = vmatprep.subr.mxu0 0.0
      %1247 = vmatpush1.msra.mxu0 0.0
      %1248 = vmatprep.subr.mxu0 0.0
      %1249 = vmatpush1.msra.mxu0 0.0
      %1250 = vmatprep.subr.mxu0 0.0
      %1251 = vmatpush1.msra.mxu0 0.0
      %1252 = vmatprep.subr.mxu0 0.0
      %1253 = vmatpush1.msra.mxu0 0.0
      %1254 = vmatprep.subr.mxu0 0.0
      %1255 = vmatpush1.msra.mxu0 0.0
      %1256 = vmatprep.subr.mxu0 0.0
      %1257 = vmatpush1.msra.mxu0 0.0
      %1258 = vmatprep.mubr.f32.mxu0 0.0
      %1259 = vmatmul.mubr.f32.gmra.mrb[0].mxu0 %v1183
      %v1260 = vpop.f32.mrb[0].mxu0
      %v1261 = vadd.f32 %v1016, %v1260
      %v1262 = vpop.f32.mrb[0].mxu0
      %1263 = vmatprep.mubr.f32.mxu0 0.0
      %1264 = vmatmul.mubr.f32.gmra.mrb[0].mxu0 %v1186
      %v1265 = vpop.f32.mrb[0].mxu0
      %v1266 = vadd.f32 %v1017, %v1265
      %v1267 = vpop.f32.mrb[0].mxu0
      %1268 = vmatprep.mubr.f32.mxu0 0.0
      %1269 = vmatmul.mubr.f32.gmra.mrb[0].mxu0 %v1189
      %v1270 = vpop.f32.mrb[0].mxu0
      %v1271 = vadd.f32 %v1018, %v1270
      %v1272 = vpop.f32.mrb[0].mxu0
      %1273 = vmatprep.mubr.f32.mxu0 0.0
      %1274 = vmatmul.mubr.f32.gmra.mrb[0].mxu0 %v1192
      %v1275 = vpop.f32.mrb[0].mxu0
      %v1276 = vadd.f32 %v1019, %v1275
      %v1277 = vpop.f32.mrb[0].mxu0
      %1278 = vdwg.mxu0
      %v1279 = vsel %vm494, %v1132, -inf
      %1280 = vmax.xlane.f32.xlu0 %v1279
      %v1281 = vpop.xlane.xlu0 %1280
      %v1282 = vsel %vm494, %v1137, -inf
      %1283 = vmax.xlane.f32.xlu0 %v1282
      %v1284 = vpop.xlane.xlu0 %1283
      %v1285 = vsel %vm494, %v1142, -inf
      %1286 = vmax.xlane.f32.xlu0 %v1285
      %v1287 = vpop.xlane.xlu0 %1286
      %v1288 = vsel %vm494, %v1147, -inf
      %1289 = vmax.xlane.f32.xlu0 %v1288
      %v1290 = vpop.xlane.xlu0 %1289
      %v1291 = vsel %vm494, %v1261, -inf
      %1292 = vmax.xlane.f32.xlu0 %v1291
      %v1293 = vpop.xlane.xlu0 %1292
      %v1294 = vsel %vm494, %v1266, -inf
      %1295 = vmax.xlane.f32.xlu0 %v1294
      %v1296 = vpop.xlane.xlu0 %1295
      %v1297 = vsel %vm494, %v1271, -inf
      %1298 = vmax.xlane.f32.xlu0 %v1297
      %v1299 = vpop.xlane.xlu0 %1298
      %v1300 = vsel %vm494, %v1276, -inf
      %1301 = vmax.xlane.f32.xlu0 %v1300
      %v1302 = vpop.xlane.xlu0 %1301
      %v1303 = vsub.f32 %v1132, %v1281
      %v1304 = vsub.f32 %v1137, %v1284
      %v1305 = vsub.f32 %v1142, %v1287
      %v1306 = vsub.f32 %v1147, %v1290
      %v1307 = vsub.f32 %v1261, %v1293
      %v1308 = vsub.f32 %v1266, %v1296
      %v1309 = vsub.f32 %v1271, %v1299
      %v1310 = vsub.f32 %v1276, %v1302
      %v1311 = vmul.f32 %v1303, 1.442695
      %v1312 = vpow.pop %v1311
      %v1313 = vmul.f32 %v1304, 1.442695
      %v1314 = vpow.pop %v1313
      %v1315 = vmul.f32 %v1305, 1.442695
      %v1316 = vpow.pop %v1315
      %v1317 = vmul.f32 %v1306, 1.442695
      %v1318 = vpow.pop %v1317
      %v1319 = vmul.f32 %v1307, 1.442695
      %v1320 = vpow.pop %v1319
      %v1321 = vmul.f32 %v1308, 1.442695
      %v1322 = vpow.pop %v1321
      %v1323 = vmul.f32 %v1309, 1.442695
      %v1324 = vpow.pop %v1323
      %v1325 = vmul.f32 %v1310, 1.442695
      %v1326 = vpow.pop %v1325
      %v1327 = vsel %vm494, %v1312, 0.0
      %1328 = vadd.xlane.f32.xlu0 %v1327
      %v1329 = vpop.xlane.xlu0 %1328
      %v1330 = vsel %vm494, %v1314, 0.0
      %1331 = vadd.xlane.f32.xlu0 %v1330
      %v1332 = vpop.xlane.xlu0 %1331
      %v1333 = vsel %vm494, %v1316, 0.0
      %1334 = vadd.xlane.f32.xlu0 %v1333
      %v1335 = vpop.xlane.xlu0 %1334
      %v1336 = vsel %vm494, %v1318, 0.0
      %1337 = vadd.xlane.f32.xlu0 %v1336
      %v1338 = vpop.xlane.xlu0 %1337
      %v1339 = vsel %vm494, %v1320, 0.0
      %1340 = vadd.xlane.f32.xlu0 %v1339
      %v1341 = vpop.xlane.xlu0 %1340
      %v1342 = vsel %vm494, %v1322, 0.0
      %1343 = vadd.xlane.f32.xlu0 %v1342
      %v1344 = vpop.xlane.xlu0 %1343
      %v1345 = vsel %vm494, %v1324, 0.0
      %1346 = vadd.xlane.f32.xlu0 %v1345
      %v1347 = vpop.xlane.xlu0 %1346
      %v1348 = vsel %vm494, %v1326, 0.0
      %1349 = vadd.xlane.f32.xlu0 %v1348
      %v1350 = vpop.xlane.xlu0 %1349
      %v1351 = vrcp.pop %v1329
      %v1352 = vmul.f32 %v1312, %v1351
      %v1353 = vrcp.pop %v1332
      %v1354 = vmul.f32 %v1314, %v1353
      %v1355 = vrcp.pop %v1335
      %v1356 = vmul.f32 %v1316, %v1355
      %v1357 = vrcp.pop %v1338
      %v1358 = vmul.f32 %v1318, %v1357
      %v1359 = vrcp.pop %v1341
      %v1360 = vmul.f32 %v1320, %v1359
      %v1361 = vrcp.pop %v1344
      %v1362 = vmul.f32 %v1322, %v1361
      %v1363 = vrcp.pop %v1347
      %v1364 = vmul.f32 %v1324, %v1363
      %v1365 = vrcp.pop %v1350
      %v1366 = vmul.f32 %v1326, %v1365
      %1367 = vrot.lane.b32.xlu0 %v874, 64
      %v1368 = vpop.permute.xlu0 %1367
      %1369 = vrot.lane.b32.xlu0 %v879, 64
      %v1370 = vpop.permute.xlu0 %1369
      %1371 = vrot.lane.b32.xlu0 %v884, 64
      %v1372 = vpop.permute.xlu0 %1371
      %1373 = vrot.lane.b32.xlu0 %v889, 64
      %v1374 = vpop.permute.xlu0 %1373
      %1375 = vrot.lane.b32.xlu0 %v894, 64
      %v1376 = vpop.permute.xlu0 %1375
      %1377 = vrot.lane.b32.xlu0 %v899, 64
      %v1378 = vpop.permute.xlu0 %1377
      %1379 = vrot.lane.b32.xlu0 %v904, 64
      %v1380 = vpop.permute.xlu0 %1379
      %1381 = vrot.lane.b32.xlu0 %v909, 64
      %v1382 = vpop.permute.xlu0 %1381
      %v1383 = vsel %vm494, %v1368, 0
      %v1385 = vsel %vm494, %v1370, 0
      %v1387 = vsel %vm494, %v1372, 0
      %v1389 = vsel %vm494, %v1374, 0
      %v1391 = vsel %vm494, %v1376, 0
      %v1393 = vsel %vm494, %v1378, 0
      %v1395 = vsel %vm494, %v1380, 0
      %v1397 = vsel %vm494, %v1382, 0
      %1399 = vmatprep.subr.mxu0 0.0
      %1400 = vmatpush1.msra.mxu0 %v1352
      %1401 = vmatprep.subr.mxu0 0.0
      %1402 = vmatpush1.msra.mxu0 %v1354
      %1403 = vmatprep.subr.mxu0 0.0
      %1404 = vmatpush1.msra.mxu0 %v1356
      %1405 = vmatprep.subr.mxu0 0.0
      %1406 = vmatpush1.msra.mxu0 %v1358
      %1407 = vmatprep.subr.mxu0 0.0
      %1408 = vmatpush1.msra.mxu0 0.0
      %1409 = vmatprep.subr.mxu0 0.0
      %1410 = vmatpush1.msra.mxu0 0.0
      %1411 = vmatprep.subr.mxu0 0.0
      %1412 = vmatpush1.msra.mxu0 0.0
      %1413 = vmatprep.subr.mxu0 0.0
      %1414 = vmatpush1.msra.mxu0 0.0
      %1415 = vmatprep.subr.mxu0 0.0
      %1416 = vmatpush1.msra.mxu0 0.0
      %1417 = vmatprep.subr.mxu0 0.0
      %1418 = vmatpush1.msra.mxu0 0.0
      %1419 = vmatprep.subr.mxu0 0.0
      %1420 = vmatpush1.msra.mxu0 0.0
      %1421 = vmatprep.subr.mxu0 0.0
      %1422 = vmatpush1.msra.mxu0 0.0
      %1423 = vmatprep.subr.mxu0 0.0
      %1424 = vmatpush1.msra.mxu0 0.0
      %1425 = vmatprep.subr.mxu0 0.0
      %1426 = vmatpush1.msra.mxu0 0.0
      %1427 = vmatprep.subr.mxu0 0.0
      %1428 = vmatpush1.msra.mxu0 0.0
      %1429 = vmatprep.subr.mxu0 0.0
      %1430 = vmatpush1.msra.mxu0 0.0
      %1431 = vmatprep.subr.mxu0 0.0
      %1432 = vmatpush1.msra.mxu0 0.0
      %1433 = vmatprep.subr.mxu0 0.0
      %1434 = vmatpush1.msra.mxu0 0.0
      %1435 = vmatprep.subr.mxu0 0.0
      %1436 = vmatpush1.msra.mxu0 0.0
      %1437 = vmatprep.subr.mxu0 0.0
      %1438 = vmatpush1.msra.mxu0 0.0
      %1439 = vmatprep.subr.mxu0 0.0
      %1440 = vmatpush1.msra.mxu0 0.0
      %1441 = vmatprep.subr.mxu0 0.0
      %1442 = vmatpush1.msra.mxu0 0.0
      %1443 = vmatprep.subr.mxu0 0.0
      %1444 = vmatpush1.msra.mxu0 0.0
      %1445 = vmatprep.subr.mxu0 0.0
      %1446 = vmatpush1.msra.mxu0 0.0
      %1447 = vmatprep.subr.mxu0 0.0
      %1448 = vmatpush1.msra.mxu0 0.0
      %1449 = vmatprep.subr.mxu0 0.0
      %1450 = vmatpush1.msra.mxu0 0.0
      %1451 = vmatprep.subr.mxu0 0.0
      %1452 = vmatpush1.msra.mxu0 0.0
      %1453 = vmatprep.subr.mxu0 0.0
      %1454 = vmatpush1.msra.mxu0 0.0
      %1455 = vmatprep.subr.mxu0 0.0
      %1456 = vmatpush1.msra.mxu0 0.0
      %1457 = vmatprep.subr.mxu0 0.0
      %1458 = vmatpush1.msra.mxu0 0.0
      %1459 = vmatprep.subr.mxu0 0.0
      %1460 = vmatpush1.msra.mxu0 0.0
      %1461 = vmatprep.subr.mxu0 0.0
      %1462 = vmatpush1.msra.mxu0 0.0
      %1463 = vmatprep.mubr.f32.mxu0 0.0
      %1464 = vmatmul.mubr.f32.gmra.mrb[0].mxu0 %v1383
      %v1465 = vpop.f32.mrb[0].mxu0
      %v1466 = vadd.f32 0.0, %v1465
      %v1467 = vpop.f32.mrb[0].mxu0
      %1468 = vmatprep.mubr.f32.mxu0 0.0
      %1469 = vmatmul.mubr.f32.gmra.mrb[0].mxu0 %v1385
      %v1470 = vpop.f32.mrb[0].mxu0
      %v1471 = vadd.f32 0.0, %v1470
      %v1472 = vpop.f32.mrb[0].mxu0
      %1473 = vmatprep.mubr.f32.mxu0 0.0
      %1474 = vmatmul.mubr.f32.gmra.mrb[0].mxu0 %v1387
      %v1475 = vpop.f32.mrb[0].mxu0
      %v1476 = vadd.f32 0.0, %v1475
      %v1477 = vpop.f32.mrb[0].mxu0
      %1478 = vmatprep.mubr.f32.mxu0 0.0
      %1479 = vmatmul.mubr.f32.gmra.mrb[0].mxu0 %v1389
      %v1480 = vpop.f32.mrb[0].mxu0
      %v1481 = vadd.f32 0.0, %v1480
      %v1482 = vpop.f32.mrb[0].mxu0
      %1483 = vmatprep.mubr.f32.mxu0 0.0
      %1484 = vmatmul.mubr.f32.gmra.mrb[0].mxu0 %v1391
      %v1485 = vpop.f32.mrb[0].mxu0
      %v1486 = vadd.f32 0.0, %v1485
      %v1487 = vpop.f32.mrb[0].mxu0
      %1488 = vmatprep.mubr.f32.mxu0 0.0
      %1489 = vmatmul.mubr.f32.gmra.mrb[0].mxu0 %v1393
      %v1490 = vpop.f32.mrb[0].mxu0
      %v1491 = vadd.f32 0.0, %v1490
      %v1492 = vpop.f32.mrb[0].mxu0
      %1493 = vmatprep.mubr.f32.mxu0 0.0
      %1494 = vmatmul.mubr.f32.gmra.mrb[0].mxu0 %v1395
      %v1495 = vpop.f32.mrb[0].mxu0
      %v1496 = vadd.f32 0.0, %v1495
      %v1497 = vpop.f32.mrb[0].mxu0
      %1498 = vmatprep.mubr.f32.mxu0 0.0
      %1499 = vmatmul.mubr.f32.gmra.mrb[0].mxu0 %v1397
      %v1500 = vpop.f32.mrb[0].mxu0
      %v1501 = vadd.f32 0.0, %v1500
      %v1502 = vpop.f32.mrb[0].mxu0
      %1503 = vdwg.mxu0
      %1504 = vrot.lane.b32.xlu0 %v914, 64
      %v1505 = vpop.permute.xlu0 %1504
      %1506 = vrot.lane.b32.xlu0 %v919, 64
      %v1507 = vpop.permute.xlu0 %1506
      %1508 = vrot.lane.b32.xlu0 %v924, 64
      %v1509 = vpop.permute.xlu0 %1508
      %1510 = vrot.lane.b32.xlu0 %v929, 64
      %v1511 = vpop.permute.xlu0 %1510
      %1512 = vrot.lane.b32.xlu0 %v934, 64
      %v1513 = vpop.permute.xlu0 %1512
      %1514 = vrot.lane.b32.xlu0 %v939, 64
      %v1515 = vpop.permute.xlu0 %1514
      %1516 = vrot.lane.b32.xlu0 %v944, 64
      %v1517 = vpop.permute.xlu0 %1516
      %1518 = vrot.lane.b32.xlu0 %v949, 64
      %v1519 = vpop.permute.xlu0 %1518
      %v1520 = vsel %vm494, %v1505, 0
      %v1522 = vsel %vm494, %v1507, 0
      %v1524 = vsel %vm494, %v1509, 0
      %v1526 = vsel %vm494, %v1511, 0
      %v1528 = vsel %vm494, %v1513, 0
      %v1530 = vsel %vm494, %v1515, 0
      %v1532 = vsel %vm494, %v1517, 0
      %v1534 = vsel %vm494, %v1519, 0
      %1536 = vmatprep.subr.mxu0 0.0
      %1537 = vmatpush1.msra.mxu0 %v1360
      %1538 = vmatprep.subr.mxu0 0.0
      %1539 = vmatpush1.msra.mxu0 %v1362
      %1540 = vmatprep.subr.mxu0 0.0
      %1541 = vmatpush1.msra.mxu0 %v1364
      %1542 = vmatprep.subr.mxu0 0.0
      %1543 = vmatpush1.msra.mxu0 %v1366
      %1544 = vmatprep.subr.mxu0 0.0
      %1545 = vmatpush1.msra.mxu0 0.0
      %1546 = vmatprep.subr.mxu0 0.0
      %1547 = vmatpush1.msra.mxu0 0.0
      %1548 = vmatprep.subr.mxu0 0.0
      %1549 = vmatpush1.msra.mxu0 0.0
      %1550 = vmatprep.subr.mxu0 0.0
      %1551 = vmatpush1.msra.mxu0 0.0
      %1552 = vmatprep.subr.mxu0 0.0
      %1553 = vmatpush1.msra.mxu0 0.0
      %1554 = vmatprep.subr.mxu0 0.0
      %1555 = vmatpush1.msra.mxu0 0.0
      %1556 = vmatprep.subr.mxu0 0.0
      %1557 = vmatpush1.msra.mxu0 0.0
      %1558 = vmatprep.subr.mxu0 0.0
      %1559 = vmatpush1.msra.mxu0 0.0
      %1560 = vmatprep.subr.mxu0 0.0
      %1561 = vmatpush1.msra.mxu0 0.0
      %1562 = vmatprep.subr.mxu0 0.0
      %1563 = vmatpush1.msra.mxu0 0.0
      %1564 = vmatprep.subr.mxu0 0.0
      %1565 = vmatpush1.msra.mxu0 0.0
      %1566 = vmatprep.subr.mxu0 0.0
      %1567 = vmatpush1.msra.mxu0 0.0
      %1568 = vmatprep.subr.mxu0 0.0
      %1569 = vmatpush1.msra.mxu0 0.0
      %1570 = vmatprep.subr.mxu0 0.0
      %1571 = vmatpush1.msra.mxu0 0.0
      %1572 = vmatprep.subr.mxu0 0.0
      %1573 = vmatpush1.msra.mxu0 0.0
      %1574 = vmatprep.subr.mxu0 0.0
      %1575 = vmatpush1.msra.mxu0 0.0
      %1576 = vmatprep.subr.mxu0 0.0
      %1577 = vmatpush1.msra.mxu0 0.0
      %1578 = vmatprep.subr.mxu0 0.0
      %1579 = vmatpush1.msra.mxu0 0.0
      %1580 = vmatprep.subr.mxu0 0.0
      %1581 = vmatpush1.msra.mxu0 0.0
      %1582 = vmatprep.subr.mxu0 0.0
      %1583 = vmatpush1.msra.mxu0 0.0
      %1584 = vmatprep.subr.mxu0 0.0
      %1585 = vmatpush1.msra.mxu0 0.0
      %1586 = vmatprep.subr.mxu0 0.0
      %1587 = vmatpush1.msra.mxu0 0.0
      %1588 = vmatprep.subr.mxu0 0.0
      %1589 = vmatpush1.msra.mxu0 0.0
      %1590 = vmatprep.subr.mxu0 0.0
      %1591 = vmatpush1.msra.mxu0 0.0
      %1592 = vmatprep.subr.mxu0 0.0
      %1593 = vmatpush1.msra.mxu0 0.0
      %1594 = vmatprep.subr.mxu0 0.0
      %1595 = vmatpush1.msra.mxu0 0.0
      %1596 = vmatprep.subr.mxu0 0.0
      %1597 = vmatpush1.msra.mxu0 0.0
      %1598 = vmatprep.subr.mxu0 0.0
      %1599 = vmatpush1.msra.mxu0 0.0
      %1600 = vmatprep.mubr.f32.mxu0 0.0
      %1601 = vmatmul.mubr.f32.gmra.mrb[0].mxu0 %v1520
      %v1602 = vpop.f32.mrb[0].mxu0
      %v1603 = vadd.f32 0.0, %v1602
      %v1604 = vpop.f32.mrb[0].mxu0
      %1605 = vmatprep.mubr.f32.mxu0 0.0
      %1606 = vmatmul.mubr.f32.gmra.mrb[0].mxu0 %v1522
      %v1607 = vpop.f32.mrb[0].mxu0
      %v1608 = vadd.f32 0.0, %v1607
      %v1609 = vpop.f32.mrb[0].mxu0
      %1610 = vmatprep.mubr.f32.mxu0 0.0
      %1611 = vmatmul.mubr.f32.gmra.mrb[0].mxu0 %v1524
      %v1612 = vpop.f32.mrb[0].mxu0
      %v1613 = vadd.f32 0.0, %v1612
      %v1614 = vpop.f32.mrb[0].mxu0
      %1615 = vmatprep.mubr.f32.mxu0 0.0
      %1616 = vmatmul.mubr.f32.gmra.mrb[0].mxu0 %v1526
      %v1617 = vpop.f32.mrb[0].mxu0
      %v1618 = vadd.f32 0.0, %v1617
      %v1619 = vpop.f32.mrb[0].mxu0
      %1620 = vmatprep.mubr.f32.mxu0 0.0
      %1621 = vmatmul.mubr.f32.gmra.mrb[0].mxu0 %v1528
      %v1622 = vpop.f32.mrb[0].mxu0
      %v1623 = vadd.f32 0.0, %v1622
      %v1624 = vpop.f32.mrb[0].mxu0
      %1625 = vmatprep.mubr.f32.mxu0 0.0
      %1626 = vmatmul.mubr.f32.gmra.mrb[0].mxu0 %v1530
      %v1627 = vpop.f32.mrb[0].mxu0
      %v1628 = vadd.f32 0.0, %v1627
      %v1629 = vpop.f32.mrb[0].mxu0
      %1630 = vmatprep.mubr.f32.mxu0 0.0
      %1631 = vmatmul.mubr.f32.gmra.mrb[0].mxu0 %v1532
      %v1632 = vpop.f32.mrb[0].mxu0
      %v1633 = vadd.f32 0.0, %v1632
      %v1634 = vpop.f32.mrb[0].mxu0
      %1635 = vmatprep.mubr.f32.mxu0 0.0
      %1636 = vmatmul.mubr.f32.gmra.mrb[0].mxu0 %v1534
      %v1637 = vpop.f32.mrb[0].mxu0
      %v1638 = vadd.f32 0.0, %v1637
      %v1639 = vpop.f32.mrb[0].mxu0
      %1640 = vdwg.mxu0
      %v1641 = vld [vmem:[%s6] sm:$0xff]
      %v1642 = vld [vmem:[%s6 + $0x8] sm:$0xff]
      %v1643 = vld [vmem:[%s6 + $0x10] sm:$0xff]
      %v1644 = vld [vmem:[%s6 + $0x18] sm:$0xff]
      %v1646 = vsel %vm494, %v1466, 0
      %v1649 = vsel %vm494, %v1471, 0
      %v1652 = vsel %vm494, %v1476, 0
      %v1655 = vsel %vm494, %v1481, 0
      %v1658 = vsel %vm494, %v1486, 0
      %v1661 = vsel %vm494, %v1491, 0
      %v1664 = vsel %vm494, %v1496, 0
      %v1667 = vsel %vm494, %v1501, 0
      %v1670 = vsel %vm494, %v1603, 0
      %v1673 = vsel %vm494, %v1608, 0
      %v1676 = vsel %vm494, %v1613, 0
      %v1679 = vsel %vm494, %v1618, 0
      %v1682 = vsel %vm494, %v1623, 0
      %v1685 = vsel %vm494, %v1628, 0
      %v1688 = vsel %vm494, %v1633, 0
      %v1691 = vsel %vm494, %v1638, 0
      %1693 = vmatprep.subr.mxu0 0.0
      %1694 = vmatpush1.msra.mxu0 %v1641
      %1695 = vmatprep.subr.mxu0 0.0
      %1696 = vmatpush1.msra.mxu0 %v1642
      %1697 = vmatprep.subr.mxu0 0.0
      %1698 = vmatpush1.msra.mxu0 %v1643
      %1699 = vmatprep.subr.mxu0 0.0
      %1700 = vmatpush1.msra.mxu0 %v1644
      %1701 = vmatprep.subr.mxu0 0.0
      %1702 = vmatpush1.msra.mxu0 0.0
      %1703 = vmatprep.subr.mxu0 0.0
      %1704 = vmatpush1.msra.mxu0 0.0
      %1705 = vmatprep.subr.mxu0 0.0
      %1706 = vmatpush1.msra.mxu0 0.0
      %1707 = vmatprep.subr.mxu0 0.0
      %1708 = vmatpush1.msra.mxu0 0.0
      %1709 = vmatprep.subr.mxu0 0.0
      %1710 = vmatpush1.msra.mxu0 0.0
      %1711 = vmatprep.subr.mxu0 0.0
      %1712 = vmatpush1.msra.mxu0 0.0
      %1713 = vmatprep.subr.mxu0 0.0
      %1714 = vmatpush1.msra.mxu0 0.0
      %1715 = vmatprep.subr.mxu0 0.0
      %1716 = vmatpush1.msra.mxu0 0.0
      %1717 = vmatprep.subr.mxu0 0.0
      %1718 = vmatpush1.msra.mxu0 0.0
      %1719 = vmatprep.subr.mxu0 0.0
      %1720 = vmatpush1.msra.mxu0 0.0
      %1721 = vmatprep.subr.mxu0 0.0
      %1722 = vmatpush1.msra.mxu0 0.0
      %1723 = vmatprep.subr.mxu0 0.0
      %1724 = vmatpush1.msra.mxu0 0.0
      %1725 = vmatprep.subr.mxu0 0.0
      %1726 = vmatpush1.msra.mxu0 0.0
      %1727 = vmatprep.subr.mxu0 0.0
      %1728 = vmatpush1.msra.mxu0 0.0
      %1729 = vmatprep.subr.mxu0 0.0
      %1730 = vmatpush1.msra.mxu0 0.0
      %1731 = vmatprep.subr.mxu0 0.0
      %1732 = vmatpush1.msra.mxu0 0.0
      %1733 = vmatprep.subr.mxu0 0.0
      %1734 = vmatpush1.msra.mxu0 0.0
      %1735 = vmatprep.subr.mxu0 0.0
      %1736 = vmatpush1.msra.mxu0 0.0
      %1737 = vmatprep.subr.mxu0 0.0
      %1738 = vmatpush1.msra.mxu0 0.0
      %1739 = vmatprep.subr.mxu0 0.0
      %1740 = vmatpush1.msra.mxu0 0.0
      %1741 = vmatprep.subr.mxu0 0.0
      %1742 = vmatpush1.msra.mxu0 0.0
      %1743 = vmatprep.subr.mxu0 0.0
      %1744 = vmatpush1.msra.mxu0 0.0
      %1745 = vmatprep.subr.mxu0 0.0
      %1746 = vmatpush1.msra.mxu0 0.0
      %1747 = vmatprep.subr.mxu0 0.0
      %1748 = vmatpush1.msra.mxu0 0.0
      %1749 = vmatprep.subr.mxu0 0.0
      %1750 = vmatpush1.msra.mxu0 0.0
      %1751 = vmatprep.subr.mxu0 0.0
      %1752 = vmatpush1.msra.mxu0 0.0
      %1753 = vmatprep.subr.mxu0 0.0
      %1754 = vmatpush1.msra.mxu0 0.0
      %1755 = vmatprep.subr.mxu0 0.0
      %1756 = vmatpush1.msra.mxu0 0.0
      %1757 = vmatprep.mubr.f32.mxu0 0.0
      %1758 = vmatmul.mubr.f32.gmra.mrb[0].mxu0 %v1646
      %v1759 = vpop.f32.mrb[0].mxu0
      %v1760 = vadd.f32 0.0, %v1759
      %v1761 = vpop.f32.mrb[0].mxu0
      %1762 = vmatprep.mubr.f32.mxu0 0.0
      %1763 = vmatmul.mubr.f32.gmra.mrb[0].mxu0 %v1649
      %v1764 = vpop.f32.mrb[0].mxu0
      %v1765 = vadd.f32 0.0, %v1764
      %v1766 = vpop.f32.mrb[0].mxu0
      %1767 = vmatprep.mubr.f32.mxu0 0.0
      %1768 = vmatmul.mubr.f32.gmra.mrb[0].mxu0 %v1652
      %v1769 = vpop.f32.mrb[0].mxu0
      %v1770 = vadd.f32 0.0, %v1769
      %v1771 = vpop.f32.mrb[0].mxu0
      %1772 = vmatprep.mubr.f32.mxu0 0.0
      %1773 = vmatmul.mubr.f32.gmra.mrb[0].mxu0 %v1655
      %v1774 = vpop.f32.mrb[0].mxu0
      %v1775 = vadd.f32 0.0, %v1774
      %v1776 = vpop.f32.mrb[0].mxu0
      %1777 = vmatprep.mubr.f32.mxu0 0.0
      %1778 = vmatmul.mubr.f32.gmra.mrb[0].mxu0 %v1658
      %v1779 = vpop.f32.mrb[0].mxu0
      %v1780 = vadd.f32 0.0, %v1779
      %v1781 = vpop.f32.mrb[0].mxu0
      %1782 = vmatprep.mubr.f32.mxu0 0.0
      %1783 = vmatmul.mubr.f32.gmra.mrb[0].mxu0 %v1661
      %v1784 = vpop.f32.mrb[0].mxu0
      %v1785 = vadd.f32 0.0, %v1784
      %v1786 = vpop.f32.mrb[0].mxu0
      %1787 = vmatprep.mubr.f32.mxu0 0.0
      %1788 = vmatmul.mubr.f32.gmra.mrb[0].mxu0 %v1664
      %v1789 = vpop.f32.mrb[0].mxu0
      %v1790 = vadd.f32 0.0, %v1789
      %v1791 = vpop.f32.mrb[0].mxu0
      %1792 = vmatprep.mubr.f32.mxu0 0.0
      %1793 = vmatmul.mubr.f32.gmra.mrb[0].mxu0 %v1667
      %v1794 = vpop.f32.mrb[0].mxu0
      %v1795 = vadd.f32 0.0, %v1794
      %v1796 = vpop.f32.mrb[0].mxu0
      %1797 = vmatprep.mubr.f32.mxu0 0.0
      %1798 = vmatmul.mubr.f32.gmra.mrb[0].mxu0 %v1670
      %v1799 = vpop.f32.mrb[0].mxu0
      %v1800 = vadd.f32 0.0, %v1799
      %v1801 = vpop.f32.mrb[0].mxu0
      %1802 = vmatprep.mubr.f32.mxu0 0.0
      %1803 = vmatmul.mubr.f32.gmra.mrb[0].mxu0 %v1673
      %v1804 = vpop.f32.mrb[0].mxu0
      %v1805 = vadd.f32 0.0, %v1804
      %v1806 = vpop.f32.mrb[0].mxu0
      %1807 = vmatprep.mubr.f32.mxu0 0.0
      %1808 = vmatmul.mubr.f32.gmra.mrb[0].mxu0 %v1676
      %v1809 = vpop.f32.mrb[0].mxu0
      %v1810 = vadd.f32 0.0, %v1809
      %v1811 = vpop.f32.mrb[0].mxu0
      %1812 = vmatprep.mubr.f32.mxu0 0.0
      %1813 = vmatmul.mubr.f32.gmra.mrb[0].mxu0 %v1679
      %v1814 = vpop.f32.mrb[0].mxu0
      %v1815 = vadd.f32 0.0, %v1814
      %v1816 = vpop.f32.mrb[0].mxu0
      %1817 = vmatprep.mubr.f32.mxu0 0.0
      %1818 = vmatmul.mubr.f32.gmra.mrb[0].mxu0 %v1682
      %v1819 = vpop.f32.mrb[0].mxu0
      %v1820 = vadd.f32 0.0, %v1819
      %v1821 = vpop.f32.mrb[0].mxu0
      %1822 = vmatprep.mubr.f32.mxu0 0.0
      %1823 = vmatmul.mubr.f32.gmra.mrb[0].mxu0 %v1685
      %v1824 = vpop.f32.mrb[0].mxu0
      %v1825 = vadd.f32 0.0, %v1824
      %v1826 = vpop.f32.mrb[0].mxu0
      %1827 = vmatprep.mubr.f32.mxu0 0.0
      %1828 = vmatmul.mubr.f32.gmra.mrb[0].mxu0 %v1688
      %v1829 = vpop.f32.mrb[0].mxu0
      %v1830 = vadd.f32 0.0, %v1829
      %v1831 = vpop.f32.mrb[0].mxu0
      %1832 = vmatprep.mubr.f32.mxu0 0.0
      %1833 = vmatmul.mubr.f32.gmra.mrb[0].mxu0 %v1691
      %v1834 = vpop.f32.mrb[0].mxu0
      %v1835 = vadd.f32 0.0, %v1834
      %v1836 = vpop.f32.mrb[0].mxu0
      %1837 = vdwg.mxu0
      %v1838 = vadd.f32 %v476, %v1760
      %v1839 = vadd.f32 %v477, %v1765
      %v1840 = vadd.f32 %v478, %v1770
      %v1841 = vadd.f32 %v479, %v1775
      %v1842 = vadd.f32 %v480, %v1780
      %v1843 = vadd.f32 %v481, %v1785
      %v1844 = vadd.f32 %v482, %v1790
      %v1845 = vadd.f32 %v483, %v1795
      %v1846 = vadd.f32 %v484, %v1800
      %v1847 = vadd.f32 %v485, %v1805
      %v1848 = vadd.f32 %v486, %v1810
      %v1849 = vadd.f32 %v487, %v1815
      %v1850 = vadd.f32 %v488, %v1820
      %v1851 = vadd.f32 %v489, %v1825
      %v1852 = vadd.f32 %v490, %v1830
      %v1853 = vadd.f32 %v491, %v1835
      %v1854 = vld [vmem:[%s7] sm:$0x1]
      %v1856 = vlaneseq
      %v1857 = vshrl.u32 %v1856, 7
      %v1858 = vsub.s32 0, %v1857
      %v1859 = vrot.slane %v1854, %v1858
      %v1861 = vadd.f32 %v1838, %v1859
      %v1862 = vadd.f32 %v1839, %v1859
      %v1863 = vadd.f32 %v1840, %v1859
      %v1864 = vadd.f32 %v1841, %v1859
      %v1865 = vadd.f32 %v1842, %v1859
      %v1866 = vadd.f32 %v1843, %v1859
      %v1867 = vadd.f32 %v1844, %v1859
      %v1868 = vadd.f32 %v1845, %v1859
      %v1869 = vadd.f32 %v1846, %v1859
      %v1870 = vadd.f32 %v1847, %v1859
      %v1871 = vadd.f32 %v1848, %v1859
      %v1872 = vadd.f32 %v1849, %v1859
      %v1873 = vadd.f32 %v1850, %v1859
      %v1874 = vadd.f32 %v1851, %v1859
      %v1875 = vadd.f32 %v1852, %v1859
      %v1876 = vadd.f32 %v1853, %v1859
      %v1877 = vld [vmem:[%s8] sm:$0x1]
      %v1878 = vld [vmem:[%s9] sm:$0x1]
      %v1879 = vsel %vm494, %v1861, 0.0
      %1880 = vadd.xlane.f32.xlu0 %v1879
      %v1881 = vpop.xlane.xlu0 %1880
      %v1882 = vsel %vm494, %v1862, 0.0
      %1883 = vadd.xlane.f32.xlu0 %v1882
      %v1884 = vpop.xlane.xlu0 %1883
      %v1885 = vsel %vm494, %v1863, 0.0
      %1886 = vadd.xlane.f32.xlu0 %v1885
      %v1887 = vpop.xlane.xlu0 %1886
      %v1888 = vsel %vm494, %v1864, 0.0
      %1889 = vadd.xlane.f32.xlu0 %v1888
      %v1890 = vpop.xlane.xlu0 %1889
      %v1891 = vsel %vm494, %v1865, 0.0
      %1892 = vadd.xlane.f32.xlu0 %v1891
      %v1893 = vpop.xlane.xlu0 %1892
      %v1894 = vsel %vm494, %v1866, 0.0
      %1895 = vadd.xlane.f32.xlu0 %v1894
      %v1896 = vpop.xlane.xlu0 %1895
      %v1897 = vsel %vm494, %v1867, 0.0
      %1898 = vadd.xlane.f32.xlu0 %v1897
      %v1899 = vpop.xlane.xlu0 %1898
      %v1900 = vsel %vm494, %v1868, 0.0
      %1901 = vadd.xlane.f32.xlu0 %v1900
      %v1902 = vpop.xlane.xlu0 %1901
      %v1903 = vsel %vm494, %v1869, 0.0
      %1904 = vadd.xlane.f32.xlu0 %v1903
      %v1905 = vpop.xlane.xlu0 %1904
      %v1906 = vsel %vm494, %v1870, 0.0
      %1907 = vadd.xlane.f32.xlu0 %v1906
      %v1908 = vpop.xlane.xlu0 %1907
      %v1909 = vsel %vm494, %v1871, 0.0
      %1910 = vadd.xlane.f32.xlu0 %v1909
      %v1911 = vpop.xlane.xlu0 %1910
      %v1912 = vsel %vm494, %v1872, 0.0
      %1913 = vadd.xlane.f32.xlu0 %v1912
      %v1914 = vpop.xlane.xlu0 %1913
      %v1915 = vsel %vm494, %v1873, 0.0
      %1916 = vadd.xlane.f32.xlu0 %v1915
      %v1917 = vpop.xlane.xlu0 %1916
      %v1918 = vsel %vm494, %v1874, 0.0
      %1919 = vadd.xlane.f32.xlu0 %v1918
      %v1920 = vpop.xlane.xlu0 %1919
      %v1921 = vsel %vm494, %v1875, 0.0
      %1922 = vadd.xlane.f32.xlu0 %v1921
      %v1923 = vpop.xlane.xlu0 %1922
      %v1924 = vsel %vm494, %v1876, 0.0
      %1925 = vadd.xlane.f32.xlu0 %v1924
      %v1926 = vpop.xlane.xlu0 %1925
      %v1927 = vmul.f32 %v1881, %v543
      %v1928 = vmul.f32 %v1884, %v543
      %v1929 = vmul.f32 %v1887, %v543
      %v1930 = vmul.f32 %v1890, %v543
      %v1931 = vmul.f32 %v1893, %v543
      %v1932 = vmul.f32 %v1896, %v543
      %v1933 = vmul.f32 %v1899, %v543
      %v1934 = vmul.f32 %v1902, %v543
      %v1935 = vmul.f32 %v1905, %v543
      %v1936 = vmul.f32 %v1908, %v543
      %v1937 = vmul.f32 %v1911, %v543
      %v1938 = vmul.f32 %v1914, %v543
      %v1939 = vmul.f32 %v1917, %v543
      %v1940 = vmul.f32 %v1920, %v543
      %v1941 = vmul.f32 %v1923, %v543
      %v1942 = vmul.f32 %v1926, %v543
      %v1943 = vsub.f32 %v1861, %v1927
      %v1944 = vsub.f32 %v1862, %v1928
      %v1945 = vsub.f32 %v1863, %v1929
      %v1946 = vsub.f32 %v1864, %v1930
      %v1947 = vsub.f32 %v1865, %v1931
      %v1948 = vsub.f32 %v1866, %v1932
      %v1949 = vsub.f32 %v1867, %v1933
      %v1950 = vsub.f32 %v1868, %v1934
      %v1951 = vsub.f32 %v1869, %v1935
      %v1952 = vsub.f32 %v1870, %v1936
      %v1953 = vsub.f32 %v1871, %v1937
      %v1954 = vsub.f32 %v1872, %v1938
      %v1955 = vsub.f32 %v1873, %v1939
      %v1956 = vsub.f32 %v1874, %v1940
      %v1957 = vsub.f32 %v1875, %v1941
      %v1958 = vsub.f32 %v1876, %v1942
      %v1959 = vmul.f32 %v1943, %v1943
      %v1960 = vmul.f32 %v1944, %v1944
      %v1961 = vmul.f32 %v1945, %v1945
      %v1962 = vmul.f32 %v1946, %v1946
      %v1963 = vmul.f32 %v1947, %v1947
      %v1964 = vmul.f32 %v1948, %v1948
      %v1965 = vmul.f32 %v1949, %v1949
      %v1966 = vmul.f32 %v1950, %v1950
      %v1967 = vmul.f32 %v1951, %v1951
      %v1968 = vmul.f32 %v1952, %v1952
      %v1969 = vmul.f32 %v1953, %v1953
      %v1970 = vmul.f32 %v1954, %v1954
      %v1971 = vmul.f32 %v1955, %v1955
      %v1972 = vmul.f32 %v1956, %v1956
      %v1973 = vmul.f32 %v1957, %v1957
      %v1974 = vmul.f32 %v1958, %v1958
      %v1975 = vsel %vm494, %v1959, 0.0
      %1976 = vadd.xlane.f32.xlu0 %v1975
      %v1977 = vpop.xlane.xlu0 %1976
      %v1978 = vsel %vm494, %v1960, 0.0
      %1979 = vadd.xlane.f32.xlu0 %v1978
      %v1980 = vpop.xlane.xlu0 %1979
      %v1981 = vsel %vm494, %v1961, 0.0
      %1982 = vadd.xlane.f32.xlu0 %v1981
      %v1983 = vpop.xlane.xlu0 %1982
      %v1984 = vsel %vm494, %v1962, 0.0
      %1985 = vadd.xlane.f32.xlu0 %v1984
      %v1986 = vpop.xlane.xlu0 %1985
      %v1987 = vsel %vm494, %v1963, 0.0
      %1988 = vadd.xlane.f32.xlu0 %v1987
      %v1989 = vpop.xlane.xlu0 %1988
      %v1990 = vsel %vm494, %v1964, 0.0
      %1991 = vadd.xlane.f32.xlu0 %v1990
      %v1992 = vpop.xlane.xlu0 %1991
      %v1993 = vsel %vm494, %v1965, 0.0
      %1994 = vadd.xlane.f32.xlu0 %v1993
      %v1995 = vpop.xlane.xlu0 %1994
      %v1996 = vsel %vm494, %v1966, 0.0
      %1997 = vadd.xlane.f32.xlu0 %v1996
      %v1998 = vpop.xlane.xlu0 %1997
      %v1999 = vsel %vm494, %v1967, 0.0
      %2000 = vadd.xlane.f32.xlu0 %v1999
      %v2001 = vpop.xlane.xlu0 %2000
      %v2002 = vsel %vm494, %v1968, 0.0
      %2003 = vadd.xlane.f32.xlu0 %v2002
      %v2004 = vpop.xlane.xlu0 %2003
      %v2005 = vsel %vm494, %v1969, 0.0
      %2006 = vadd.xlane.f32.xlu0 %v2005
      %v2007 = vpop.xlane.xlu0 %2006
      %v2008 = vsel %vm494, %v1970, 0.0
      %2009 = vadd.xlane.f32.xlu0 %v2008
      %v2010 = vpop.xlane.xlu0 %2009
      %v2011 = vsel %vm494, %v1971, 0.0
      %2012 = vadd.xlane.f32.xlu0 %v2011
      %v2013 = vpop.xlane.xlu0 %2012
      %v2014 = vsel %vm494, %v1972, 0.0
      %2015 = vadd.xlane.f32.xlu0 %v2014
      %v2016 = vpop.xlane.xlu0 %2015
      %v2017 = vsel %vm494, %v1973, 0.0
      %2018 = vadd.xlane.f32.xlu0 %v2017
      %v2019 = vpop.xlane.xlu0 %2018
      %v2020 = vsel %vm494, %v1974, 0.0
      %2021 = vadd.xlane.f32.xlu0 %v2020
      %v2022 = vpop.xlane.xlu0 %2021
      %v2023 = vmul.f32 %v1977, %v543
      %v2024 = vmul.f32 %v1980, %v543
      %v2025 = vmul.f32 %v1983, %v543
      %v2026 = vmul.f32 %v1986, %v543
      %v2027 = vmul.f32 %v1989, %v543
      %v2028 = vmul.f32 %v1992, %v543
      %v2029 = vmul.f32 %v1995, %v543
      %v2030 = vmul.f32 %v1998, %v543
      %v2031 = vmul.f32 %v2001, %v543
      %v2032 = vmul.f32 %v2004, %v543
      %v2033 = vmul.f32 %v2007, %v543
      %v2034 = vmul.f32 %v2010, %v543
      %v2035 = vmul.f32 %v2013, %v543
      %v2036 = vmul.f32 %v2016, %v543
      %v2037 = vmul.f32 %v2019, %v543
      %v2038 = vmul.f32 %v2022, %v543
      %v2039 = vadd.f32 %v2023, 1e-05
      %v2040 = vadd.f32 %v2024, 1e-05
      %v2041 = vadd.f32 %v2025, 1e-05
      %v2042 = vadd.f32 %v2026, 1e-05
      %v2043 = vadd.f32 %v2027, 1e-05
      %v2044 = vadd.f32 %v2028, 1e-05
      %v2045 = vadd.f32 %v2029, 1e-05
      %v2046 = vadd.f32 %v2030, 1e-05
      %v2047 = vadd.f32 %v2031, 1e-05
      %v2048 = vadd.f32 %v2032, 1e-05
      %v2049 = vadd.f32 %v2033, 1e-05
      %v2050 = vadd.f32 %v2034, 1e-05
      %v2051 = vadd.f32 %v2035, 1e-05
      %v2052 = vadd.f32 %v2036, 1e-05
      %v2053 = vadd.f32 %v2037, 1e-05
      %v2054 = vadd.f32 %v2038, 1e-05
      %v2055 = vrsqrt.pop %v2039
      %v2056 = vrsqrt.pop %v2040
      %v2057 = vrsqrt.pop %v2041
      %v2058 = vrsqrt.pop %v2042
      %v2059 = vrsqrt.pop %v2043
      %v2060 = vrsqrt.pop %v2044
      %v2061 = vrsqrt.pop %v2045
      %v2062 = vrsqrt.pop %v2046
      %v2063 = vrsqrt.pop %v2047
      %v2064 = vrsqrt.pop %v2048
      %v2065 = vrsqrt.pop %v2049
      %v2066 = vrsqrt.pop %v2050
      %v2067 = vrsqrt.pop %v2051
      %v2068 = vrsqrt.pop %v2052
      %v2069 = vrsqrt.pop %v2053
      %v2070 = vrsqrt.pop %v2054
      %v2071 = vmul.f32 %v1943, %v2055
      %v2072 = vmul.f32 %v1944, %v2056
      %v2073 = vmul.f32 %v1945, %v2057
      %v2074 = vmul.f32 %v1946, %v2058
      %v2075 = vmul.f32 %v1947, %v2059
      %v2076 = vmul.f32 %v1948, %v2060
      %v2077 = vmul.f32 %v1949, %v2061
      %v2078 = vmul.f32 %v1950, %v2062
      %v2079 = vmul.f32 %v1951, %v2063
      %v2080 = vmul.f32 %v1952, %v2064
      %v2081 = vmul.f32 %v1953, %v2065
      %v2082 = vmul.f32 %v1954, %v2066
      %v2083 = vmul.f32 %v1955, %v2067
      %v2084 = vmul.f32 %v1956, %v2068
      %v2085 = vmul.f32 %v1957, %v2069
      %v2086 = vmul.f32 %v1958, %v2070
      %v2088 = vlaneseq
      %v2089 = vshrl.u32 %v2088, 7
      %v2090 = vsub.s32 0, %v2089
      %v2091 = vrot.slane %v1877, %v2090
      %v2093 = vmul.f32 %v2071, %v2091
      %v2094 = vmul.f32 %v2072, %v2091
      %v2095 = vmul.f32 %v2073, %v2091
      %v2096 = vmul.f32 %v2074, %v2091
      %v2097 = vmul.f32 %v2075, %v2091
      %v2098 = vmul.f32 %v2076, %v2091
      %v2099 = vmul.f32 %v2077, %v2091
      %v2100 = vmul.f32 %v2078, %v2091
      %v2101 = vmul.f32 %v2079, %v2091
      %v2102 = vmul.f32 %v2080, %v2091
      %v2103 = vmul.f32 %v2081, %v2091
      %v2104 = vmul.f32 %v2082, %v2091
      %v2105 = vmul.f32 %v2083, %v2091
      %v2106 = vmul.f32 %v2084, %v2091
      %v2107 = vmul.f32 %v2085, %v2091
      %v2108 = vmul.f32 %v2086, %v2091
      %v2110 = vlaneseq
      %v2111 = vshrl.u32 %v2110, 7
      %v2112 = vsub.s32 0, %v2111
      %v2113 = vrot.slane %v1878, %v2112
      %v2115 = vadd.f32 %v2093, %v2113
      %v2116 = vadd.f32 %v2094, %v2113
      %v2117 = vadd.f32 %v2095, %v2113
      %v2118 = vadd.f32 %v2096, %v2113
      %v2119 = vadd.f32 %v2097, %v2113
      %v2120 = vadd.f32 %v2098, %v2113
      %v2121 = vadd.f32 %v2099, %v2113
      %v2122 = vadd.f32 %v2100, %v2113
      %v2123 = vadd.f32 %v2101, %v2113
      %v2124 = vadd.f32 %v2102, %v2113
      %v2125 = vadd.f32 %v2103, %v2113
      %v2126 = vadd.f32 %v2104, %v2113
      %v2127 = vadd.f32 %v2105, %v2113
      %v2128 = vadd.f32 %v2106, %v2113
      %v2129 = vadd.f32 %v2107, %v2113
      %v2130 = vadd.f32 %v2108, %v2113
      %v2131 = vld [vmem:[%s10] sm:$0xff]
      %v2132 = vld [vmem:[%s10 + $0x8] sm:$0xff]
      %v2133 = vld [vmem:[%s10 + $0x10] sm:$0xff]
      %v2134 = vld [vmem:[%s10 + $0x18] sm:$0xff]
      %v2135 = vld [vmem:[%s11] sm:$0x1]
      %v2137 = vlaneseq
      %v2138 = vshrl.u32 %v2137, 7
      %v2139 = vsub.s32 0, %v2138
      %v2140 = vrot.slane %v2135, %v2139
      %v2143 = vsel %vm494, %v2115, 0
      %v2146 = vsel %vm494, %v2116, 0
      %v2149 = vsel %vm494, %v2117, 0
      %v2152 = vsel %vm494, %v2118, 0
      %v2155 = vsel %vm494, %v2119, 0
      %v2158 = vsel %vm494, %v2120, 0
      %v2161 = vsel %vm494, %v2121, 0
      %v2164 = vsel %vm494, %v2122, 0
      %v2167 = vsel %vm494, %v2123, 0
      %v2170 = vsel %vm494, %v2124, 0
      %v2173 = vsel %vm494, %v2125, 0
      %v2176 = vsel %vm494, %v2126, 0
      %v2179 = vsel %vm494, %v2127, 0
      %v2182 = vsel %vm494, %v2128, 0
      %v2185 = vsel %vm494, %v2129, 0
      %v2188 = vsel %vm494, %v2130, 0
      %2190 = vmatprep.subr.mxu0 0.0
      %2191 = vmatpush1.msra.mxu0 %v2131
      %2192 = vmatprep.subr.mxu0 0.0
      %2193 = vmatpush1.msra.mxu0 %v2132
      %2194 = vmatprep.subr.mxu0 0.0
      %2195 = vmatpush1.msra.mxu0 %v2133
      %2196 = vmatprep.subr.mxu0 0.0
      %2197 = vmatpush1.msra.mxu0 %v2134
      %2198 = vmatprep.subr.mxu0 0.0
      %2199 = vmatpush1.msra.mxu0 0.0
      %2200 = vmatprep.subr.mxu0 0.0
      %2201 = vmatpush1.msra.mxu0 0.0
      %2202 = vmatprep.subr.mxu0 0.0
      %2203 = vmatpush1.msra.mxu0 0.0
      %2204 = vmatprep.subr.mxu0 0.0
      %2205 = vmatpush1.msra.mxu0 0.0
      %2206 = vmatprep.subr.mxu0 0.0
      %2207 = vmatpush1.msra.mxu0 0.0
      %2208 = vmatprep.subr.mxu0 0.0
      %2209 = vmatpush1.msra.mxu0 0.0
      %2210 = vmatprep.subr.mxu0 0.0
      %2211 = vmatpush1.msra.mxu0 0.0
      %2212 = vmatprep.subr.mxu0 0.0
      %2213 = vmatpush1.msra.mxu0 0.0
      %2214 = vmatprep.subr.mxu0 0.0
      %2215 = vmatpush1.msra.mxu0 0.0
      %2216 = vmatprep.subr.mxu0 0.0
      %2217 = vmatpush1.msra.mxu0 0.0
      %2218 = vmatprep.subr.mxu0 0.0
      %2219 = vmatpush1.msra.mxu0 0.0
      %2220 = vmatprep.subr.mxu0 0.0
      %2221 = vmatpush1.msra.mxu0 0.0
      %2222 = vmatprep.subr.mxu0 0.0
      %2223 = vmatpush1.msra.mxu0 0.0
      %2224 = vmatprep.subr.mxu0 0.0
      %2225 = vmatpush1.msra.mxu0 0.0
      %2226 = vmatprep.subr.mxu0 0.0
      %2227 = vmatpush1.msra.mxu0 0.0
      %2228 = vmatprep.subr.mxu0 0.0
      %2229 = vmatpush1.msra.mxu0 0.0
      %2230 = vmatprep.subr.mxu0 0.0
      %2231 = vmatpush1.msra.mxu0 0.0
      %2232 = vmatprep.subr.mxu0 0.0
      %2233 = vmatpush1.msra.mxu0 0.0
      %2234 = vmatprep.subr.mxu0 0.0
      %2235 = vmatpush1.msra.mxu0 0.0
      %2236 = vmatprep.subr.mxu0 0.0
      %2237 = vmatpush1.msra.mxu0 0.0
      %2238 = vmatprep.subr.mxu0 0.0
      %2239 = vmatpush1.msra.mxu0 0.0
      %2240 = vmatprep.subr.mxu0 0.0
      %2241 = vmatpush1.msra.mxu0 0.0
      %2242 = vmatprep.subr.mxu0 0.0
      %2243 = vmatpush1.msra.mxu0 0.0
      %2244 = vmatprep.subr.mxu0 0.0
      %2245 = vmatpush1.msra.mxu0 0.0
      %2246 = vmatprep.subr.mxu0 0.0
      %2247 = vmatpush1.msra.mxu0 0.0
      %2248 = vmatprep.subr.mxu0 0.0
      %2249 = vmatpush1.msra.mxu0 0.0
      %2250 = vmatprep.subr.mxu0 0.0
      %2251 = vmatpush1.msra.mxu0 0.0
      %2252 = vmatprep.subr.mxu0 0.0
      %2253 = vmatpush1.msra.mxu0 0.0
      %2254 = vmatprep.mubr.f32.mxu0 0.0
      %2255 = vmatmul.mubr.f32.gmra.mrb[0].mxu0 %v2143
      %v2256 = vpop.f32.mrb[0].mxu0
      %v2257 = vadd.f32 %v2140, %v2256
      %v2258 = vpop.f32.mrb[0].mxu0
      %2259 = vmatprep.mubr.f32.mxu0 0.0
      %2260 = vmatmul.mubr.f32.gmra.mrb[0].mxu0 %v2146
      %v2261 = vpop.f32.mrb[0].mxu0
      %v2262 = vadd.f32 %v2140, %v2261
      %v2263 = vpop.f32.mrb[0].mxu0
      %2264 = vmatprep.mubr.f32.mxu0 0.0
      %2265 = vmatmul.mubr.f32.gmra.mrb[0].mxu0 %v2149
      %v2266 = vpop.f32.mrb[0].mxu0
      %v2267 = vadd.f32 %v2140, %v2266
      %v2268 = vpop.f32.mrb[0].mxu0
      %2269 = vmatprep.mubr.f32.mxu0 0.0
      %2270 = vmatmul.mubr.f32.gmra.mrb[0].mxu0 %v2152
      %v2271 = vpop.f32.mrb[0].mxu0
      %v2272 = vadd.f32 %v2140, %v2271
      %v2273 = vpop.f32.mrb[0].mxu0
      %2274 = vmatprep.mubr.f32.mxu0 0.0
      %2275 = vmatmul.mubr.f32.gmra.mrb[0].mxu0 %v2155
      %v2276 = vpop.f32.mrb[0].mxu0
      %v2277 = vadd.f32 %v2140, %v2276
      %v2278 = vpop.f32.mrb[0].mxu0
      %2279 = vmatprep.mubr.f32.mxu0 0.0
      %2280 = vmatmul.mubr.f32.gmra.mrb[0].mxu0 %v2158
      %v2281 = vpop.f32.mrb[0].mxu0
      %v2282 = vadd.f32 %v2140, %v2281
      %v2283 = vpop.f32.mrb[0].mxu0
      %2284 = vmatprep.mubr.f32.mxu0 0.0
      %2285 = vmatmul.mubr.f32.gmra.mrb[0].mxu0 %v2161
      %v2286 = vpop.f32.mrb[0].mxu0
      %v2287 = vadd.f32 %v2140, %v2286
      %v2288 = vpop.f32.mrb[0].mxu0
      %2289 = vmatprep.mubr.f32.mxu0 0.0
      %2290 = vmatmul.mubr.f32.gmra.mrb[0].mxu0 %v2164
      %v2291 = vpop.f32.mrb[0].mxu0
      %v2292 = vadd.f32 %v2140, %v2291
      %v2293 = vpop.f32.mrb[0].mxu0
      %2294 = vmatprep.mubr.f32.mxu0 0.0
      %2295 = vmatmul.mubr.f32.gmra.mrb[0].mxu0 %v2167
      %v2296 = vpop.f32.mrb[0].mxu0
      %v2297 = vadd.f32 %v2140, %v2296
      %v2298 = vpop.f32.mrb[0].mxu0
      %2299 = vmatprep.mubr.f32.mxu0 0.0
      %2300 = vmatmul.mubr.f32.gmra.mrb[0].mxu0 %v2170
      %v2301 = vpop.f32.mrb[0].mxu0
      %v2302 = vadd.f32 %v2140, %v2301
      %v2303 = vpop.f32.mrb[0].mxu0
      %2304 = vmatprep.mubr.f32.mxu0 0.0
      %2305 = vmatmul.mubr.f32.gmra.mrb[0].mxu0 %v2173
      %v2306 = vpop.f32.mrb[0].mxu0
      %v2307 = vadd.f32 %v2140, %v2306
      %v2308 = vpop.f32.mrb[0].mxu0
      %2309 = vmatprep.mubr.f32.mxu0 0.0
      %2310 = vmatmul.mubr.f32.gmra.mrb[0].mxu0 %v2176
      %v2311 = vpop.f32.mrb[0].mxu0
      %v2312 = vadd.f32 %v2140, %v2311
      %v2313 = vpop.f32.mrb[0].mxu0
      %2314 = vmatprep.mubr.f32.mxu0 0.0
      %2315 = vmatmul.mubr.f32.gmra.mrb[0].mxu0 %v2179
      %v2316 = vpop.f32.mrb[0].mxu0
      %v2317 = vadd.f32 %v2140, %v2316
      %v2318 = vpop.f32.mrb[0].mxu0
      %2319 = vmatprep.mubr.f32.mxu0 0.0
      %2320 = vmatmul.mubr.f32.gmra.mrb[0].mxu0 %v2182
      %v2321 = vpop.f32.mrb[0].mxu0
      %v2322 = vadd.f32 %v2140, %v2321
      %v2323 = vpop.f32.mrb[0].mxu0
      %2324 = vmatprep.mubr.f32.mxu0 0.0
      %2325 = vmatmul.mubr.f32.gmra.mrb[0].mxu0 %v2185
      %v2326 = vpop.f32.mrb[0].mxu0
      %v2327 = vadd.f32 %v2140, %v2326
      %v2328 = vpop.f32.mrb[0].mxu0
      %2329 = vmatprep.mubr.f32.mxu0 0.0
      %2330 = vmatmul.mubr.f32.gmra.mrb[0].mxu0 %v2188
      %v2331 = vpop.f32.mrb[0].mxu0
      %v2332 = vadd.f32 %v2140, %v2331
      %v2333 = vpop.f32.mrb[0].mxu0
      %2334 = vdwg.mxu0
      %v2335 = vmul.f32 %v2257, 0.5
      %v2336 = vmul.f32 %v2262, 0.5
      %v2337 = vmul.f32 %v2267, 0.5
      %v2338 = vmul.f32 %v2272, 0.5
      %v2339 = vmul.f32 %v2277, 0.5
      %v2340 = vmul.f32 %v2282, 0.5
      %v2341 = vmul.f32 %v2287, 0.5
      %v2342 = vmul.f32 %v2292, 0.5
      %v2343 = vmul.f32 %v2297, 0.5
      %v2344 = vmul.f32 %v2302, 0.5
      %v2345 = vmul.f32 %v2307, 0.5
      %v2346 = vmul.f32 %v2312, 0.5
      %v2347 = vmul.f32 %v2317, 0.5
      %v2348 = vmul.f32 %v2322, 0.5
      %v2349 = vmul.f32 %v2327, 0.5
      %v2350 = vmul.f32 %v2332, 0.5
      %v2351 = vmul.f32 %v2257, 0.044715
      %v2352 = vmul.f32 %v2262, 0.044715
      %v2353 = vmul.f32 %v2267, 0.044715
      %v2354 = vmul.f32 %v2272, 0.044715
      %v2355 = vmul.f32 %v2277, 0.044715
      %v2356 = vmul.f32 %v2282, 0.044715
      %v2357 = vmul.f32 %v2287, 0.044715
      %v2358 = vmul.f32 %v2292, 0.044715
      %v2359 = vmul.f32 %v2297, 0.044715
      %v2360 = vmul.f32 %v2302, 0.044715
      %v2361 = vmul.f32 %v2307, 0.044715
      %v2362 = vmul.f32 %v2312, 0.044715
      %v2363 = vmul.f32 %v2317, 0.044715
      %v2364 = vmul.f32 %v2322, 0.044715
      %v2365 = vmul.f32 %v2327, 0.044715
      %v2366 = vmul.f32 %v2332, 0.044715
      %v2367 = vmul.f32 %v2351, %v2257
      %v2368 = vmul.f32 %v2352, %v2262
      %v2369 = vmul.f32 %v2353, %v2267
      %v2370 = vmul.f32 %v2354, %v2272
      %v2371 = vmul.f32 %v2355, %v2277
      %v2372 = vmul.f32 %v2356, %v2282
      %v2373 = vmul.f32 %v2357, %v2287
      %v2374 = vmul.f32 %v2358, %v2292
      %v2375 = vmul.f32 %v2359, %v2297
      %v2376 = vmul.f32 %v2360, %v2302
      %v2377 = vmul.f32 %v2361, %v2307
      %v2378 = vmul.f32 %v2362, %v2312
      %v2379 = vmul.f32 %v2363, %v2317
      %v2380 = vmul.f32 %v2364, %v2322
      %v2381 = vmul.f32 %v2365, %v2327
      %v2382 = vmul.f32 %v2366, %v2332
      %v2383 = vmul.f32 %v2367, %v2257
      %v2384 = vmul.f32 %v2368, %v2262
      %v2385 = vmul.f32 %v2369, %v2267
      %v2386 = vmul.f32 %v2370, %v2272
      %v2387 = vmul.f32 %v2371, %v2277
      %v2388 = vmul.f32 %v2372, %v2282
      %v2389 = vmul.f32 %v2373, %v2287
      %v2390 = vmul.f32 %v2374, %v2292
      %v2391 = vmul.f32 %v2375, %v2297
      %v2392 = vmul.f32 %v2376, %v2302
      %v2393 = vmul.f32 %v2377, %v2307
      %v2394 = vmul.f32 %v2378, %v2312
      %v2395 = vmul.f32 %v2379, %v2317
      %v2396 = vmul.f32 %v2380, %v2322
      %v2397 = vmul.f32 %v2381, %v2327
      %v2398 = vmul.f32 %v2382, %v2332
      %v2399 = vadd.f32 %v2257, %v2383
      %v2400 = vadd.f32 %v2262, %v2384
      %v2401 = vadd.f32 %v2267, %v2385
      %v2402 = vadd.f32 %v2272, %v2386
      %v2403 = vadd.f32 %v2277, %v2387
      %v2404 = vadd.f32 %v2282, %v2388
      %v2405 = vadd.f32 %v2287, %v2389
      %v2406 = vadd.f32 %v2292, %v2390
      %v2407 = vadd.f32 %v2297, %v2391
      %v2408 = vadd.f32 %v2302, %v2392
      %v2409 = vadd.f32 %v2307, %v2393
      %v2410 = vadd.f32 %v2312, %v2394
      %v2411 = vadd.f32 %v2317, %v2395
      %v2412 = vadd.f32 %v2322, %v2396
      %v2413 = vadd.f32 %v2327, %v2397
      %v2414 = vadd.f32 %v2332, %v2398
      %v2415 = vmul.f32 %v2399, 0.7978846
      %v2416 = vmul.f32 %v2400, 0.7978846
      %v2417 = vmul.f32 %v2401, 0.7978846
      %v2418 = vmul.f32 %v2402, 0.7978846
      %v2419 = vmul.f32 %v2403, 0.7978846
      %v2420 = vmul.f32 %v2404, 0.7978846
      %v2421 = vmul.f32 %v2405, 0.7978846
      %v2422 = vmul.f32 %v2406, 0.7978846
      %v2423 = vmul.f32 %v2407, 0.7978846
      %v2424 = vmul.f32 %v2408, 0.7978846
      %v2425 = vmul.f32 %v2409, 0.7978846
      %v2426 = vmul.f32 %v2410, 0.7978846
      %v2427 = vmul.f32 %v2411, 0.7978846
      %v2428 = vmul.f32 %v2412, 0.7978846
      %v2429 = vmul.f32 %v2413, 0.7978846
      %v2430 = vmul.f32 %v2414, 0.7978846
      %v2431 = vtanh.pop %v2415
      %v2432 = vtanh.pop %v2416
      %v2433 = vtanh.pop %v2417
      %v2434 = vtanh.pop %v2418
      %v2435 = vtanh.pop %v2419
      %v2436 = vtanh.pop %v2420
      %v2437 = vtanh.pop %v2421
      %v2438 = vtanh.pop %v2422
      %v2439 = vtanh.pop %v2423
      %v2440 = vtanh.pop %v2424
      %v2441 = vtanh.pop %v2425
      %v2442 = vtanh.pop %v2426
      %v2443 = vtanh.pop %v2427
      %v2444 = vtanh.pop %v2428
      %v2445 = vtanh.pop %v2429
      %v2446 = vtanh.pop %v2430
      %v2447 = vadd.f32 %v2431, 1.0
      %v2448 = vadd.f32 %v2432, 1.0
      %v2449 = vadd.f32 %v2433, 1.0
      %v2450 = vadd.f32 %v2434, 1.0
      %v2451 = vadd.f32 %v2435, 1.0
      %v2452 = vadd.f32 %v2436, 1.0
      %v2453 = vadd.f32 %v2437, 1.0
      %v2454 = vadd.f32 %v2438, 1.0
      %v2455 = vadd.f32 %v2439, 1.0
      %v2456 = vadd.f32 %v2440, 1.0
      %v2457 = vadd.f32 %v2441, 1.0
      %v2458 = vadd.f32 %v2442, 1.0
      %v2459 = vadd.f32 %v2443, 1.0
      %v2460 = vadd.f32 %v2444, 1.0
      %v2461 = vadd.f32 %v2445, 1.0
      %v2462 = vadd.f32 %v2446, 1.0
      %v2463 = vmul.f32 %v2335, %v2447
      %v2464 = vmul.f32 %v2336, %v2448
      %v2465 = vmul.f32 %v2337, %v2449
      %v2466 = vmul.f32 %v2338, %v2450
      %v2467 = vmul.f32 %v2339, %v2451
      %v2468 = vmul.f32 %v2340, %v2452
      %v2469 = vmul.f32 %v2341, %v2453
      %v2470 = vmul.f32 %v2342, %v2454
      %v2471 = vmul.f32 %v2343, %v2455
      %v2472 = vmul.f32 %v2344, %v2456
      %v2473 = vmul.f32 %v2345, %v2457
      %v2474 = vmul.f32 %v2346, %v2458
      %v2475 = vmul.f32 %v2347, %v2459
      %v2476 = vmul.f32 %v2348, %v2460
      %v2477 = vmul.f32 %v2349, %v2461
      %v2478 = vmul.f32 %v2350, %v2462
      %v2479 = vld [vmem:[%s12] sm:$0xff]
      %v2480 = vld [vmem:[%s12 + $0x8] sm:$0xff]
      %v2481 = vld [vmem:[%s12 + $0x10] sm:$0xff]
      %v2482 = vld [vmem:[%s12 + $0x18] sm:$0xff]
      %v2483 = vld [vmem:[%s12 + $0x20] sm:$0xff]
      %v2484 = vld [vmem:[%s12 + $0x28] sm:$0xff]
      %v2485 = vld [vmem:[%s12 + $0x30] sm:$0xff]
      %v2486 = vld [vmem:[%s12 + $0x38] sm:$0xff]
      %v2487 = vld [vmem:[%s12 + $0x40] sm:$0xff]
      %v2488 = vld [vmem:[%s12 + $0x48] sm:$0xff]
      %v2489 = vld [vmem:[%s12 + $0x50] sm:$0xff]
      %v2490 = vld [vmem:[%s12 + $0x58] sm:$0xff]
      %v2491 = vld [vmem:[%s12 + $0x60] sm:$0xff]
      %v2492 = vld [vmem:[%s12 + $0x68] sm:$0xff]
      %v2493 = vld [vmem:[%s12 + $0x70] sm:$0xff]
      %v2494 = vld [vmem:[%s12 + $0x78] sm:$0xff]
      %2495 = vmatprep.subr.mxu0 0.0
      %2496 = vmatpush1.msra.mxu0 %v2479
      %2497 = vmatprep.subr.mxu0 0.0
      %2498 = vmatpush1.msra.mxu0 %v2480
      %2499 = vmatprep.subr.mxu0 0.0
      %2500 = vmatpush1.msra.mxu0 %v2481
      %2501 = vmatprep.subr.mxu0 0.0
      %2502 = vmatpush1.msra.mxu0 %v2482
      %2503 = vmatprep.subr.mxu0 0.0
      %2504 = vmatpush1.msra.mxu0 %v2483
      %2505 = vmatprep.subr.mxu0 0.0
      %2506 = vmatpush1.msra.mxu0 %v2484
      %2507 = vmatprep.subr.mxu0 0.0
      %2508 = vmatpush1.msra.mxu0 %v2485
      %2509 = vmatprep.subr.mxu0 0.0
      %2510 = vmatpush1.msra.mxu0 %v2486
      %2511 = vmatprep.subr.mxu0 0.0
      %2512 = vmatpush1.msra.mxu0 %v2487
      %2513 = vmatprep.subr.mxu0 0.0
      %2514 = vmatpush1.msra.mxu0 %v2488
      %2515 = vmatprep.subr.mxu0 0.0
      %2516 = vmatpush1.msra.mxu0 %v2489
      %2517 = vmatprep.subr.mxu0 0.0
      %2518 = vmatpush1.msra.mxu0 %v2490
      %2519 = vmatprep.subr.mxu0 0.0
      %2520 = vmatpush1.msra.mxu0 %v2491
      %2521 = vmatprep.subr.mxu0 0.0
      %2522 = vmatpush1.msra.mxu0 %v2492
      %2523 = vmatprep.subr.mxu0 0.0
      %2524 = vmatpush1.msra.mxu0 %v2493
      %2525 = vmatprep.subr.mxu0 0.0
      %2526 = vmatpush1.msra.mxu0 %v2494
      %2527 = vmatprep.subr.mxu0 0.0
      %2528 = vmatpush1.msra.mxu0 0.0
      %2529 = vmatprep.subr.mxu0 0.0
      %2530 = vmatpush1.msra.mxu0 0.0
      %2531 = vmatprep.subr.mxu0 0.0
      %2532 = vmatpush1.msra.mxu0 0.0
      %2533 = vmatprep.subr.mxu0 0.0
      %2534 = vmatpush1.msra.mxu0 0.0
      %2535 = vmatprep.subr.mxu0 0.0
      %2536 = vmatpush1.msra.mxu0 0.0
      %2537 = vmatprep.subr.mxu0 0.0
      %2538 = vmatpush1.msra.mxu0 0.0
      %2539 = vmatprep.subr.mxu0 0.0
      %2540 = vmatpush1.msra.mxu0 0.0
      %2541 = vmatprep.subr.mxu0 0.0
      %2542 = vmatpush1.msra.mxu0 0.0
      %2543 = vmatprep.subr.mxu0 0.0
      %2544 = vmatpush1.msra.mxu0 0.0
      %2545 = vmatprep.subr.mxu0 0.0
      %2546 = vmatpush1.msra.mxu0 0.0
      %2547 = vmatprep.subr.mxu0 0.0
      %2548 = vmatpush1.msra.mxu0 0.0
      %2549 = vmatprep.subr.mxu0 0.0
      %2550 = vmatpush1.msra.mxu0 0.0
      %2551 = vmatprep.subr.mxu0 0.0
      %2552 = vmatpush1.msra.mxu0 0.0
      %2553 = vmatprep.subr.mxu0 0.0
      %2554 = vmatpush1.msra.mxu0 0.0
      %2555 = vmatprep.subr.mxu0 0.0
      %2556 = vmatpush1.msra.mxu0 0.0
      %2557 = vmatprep.subr.mxu0 0.0
      %2558 = vmatpush1.msra.mxu0 0.0
      %2559 = vmatprep.mubr.f32.mxu0 0.0
      %2560 = vmatmul.mubr.f32.gmra.mrb[0].mxu0 %v2463
      %v2561 = vpop.f32.mrb[0].mxu0
      %v2562 = vadd.f32 0.0, %v2561
      %v2563 = vpop.f32.mrb[0].mxu0
      %2564 = vmatprep.mubr.f32.mxu0 0.0
      %2565 = vmatmul.mubr.f32.gmra.mrb[0].mxu0 %v2464
      %v2566 = vpop.f32.mrb[0].mxu0
      %v2567 = vadd.f32 0.0, %v2566
      %v2568 = vpop.f32.mrb[0].mxu0
      %2569 = vmatprep.mubr.f32.mxu0 0.0
      %2570 = vmatmul.mubr.f32.gmra.mrb[0].mxu0 %v2465
      %v2571 = vpop.f32.mrb[0].mxu0
      %v2572 = vadd.f32 0.0, %v2571
      %v2573 = vpop.f32.mrb[0].mxu0
      %2574 = vmatprep.mubr.f32.mxu0 0.0
      %2575 = vmatmul.mubr.f32.gmra.mrb[0].mxu0 %v2466
      %v2576 = vpop.f32.mrb[0].mxu0
      %v2577 = vadd.f32 0.0, %v2576
      %v2578 = vpop.f32.mrb[0].mxu0
      %2579 = vmatprep.mubr.f32.mxu0 0.0
      %2580 = vmatmul.mubr.f32.gmra.mrb[0].mxu0 %v2467
      %v2581 = vpop.f32.mrb[0].mxu0
      %v2582 = vadd.f32 0.0, %v2581
      %v2583 = vpop.f32.mrb[0].mxu0
      %2584 = vmatprep.mubr.f32.mxu0 0.0
      %2585 = vmatmul.mubr.f32.gmra.mrb[0].mxu0 %v2468
      %v2586 = vpop.f32.mrb[0].mxu0
      %v2587 = vadd.f32 0.0, %v2586
      %v2588 = vpop.f32.mrb[0].mxu0
      %2589 = vmatprep.mubr.f32.mxu0 0.0
      %2590 = vmatmul.mubr.f32.gmra.mrb[0].mxu0 %v2469
      %v2591 = vpop.f32.mrb[0].mxu0
      %v2592 = vadd.f32 0.0, %v2591
      %v2593 = vpop.f32.mrb[0].mxu0
      %2594 = vmatprep.mubr.f32.mxu0 0.0
      %2595 = vmatmul.mubr.f32.gmra.mrb[0].mxu0 %v2470
      %v2596 = vpop.f32.mrb[0].mxu0
      %v2597 = vadd.f32 0.0, %v2596
      %v2598 = vpop.f32.mrb[0].mxu0
      %2599 = vmatprep.mubr.f32.mxu0 0.0
      %2600 = vmatmul.mubr.f32.gmra.mrb[0].mxu0 %v2471
      %v2601 = vpop.f32.mrb[0].mxu0
      %v2602 = vadd.f32 0.0, %v2601
      %v2603 = vpop.f32.mrb[0].mxu0
      %2604 = vmatprep.mubr.f32.mxu0 0.0
      %2605 = vmatmul.mubr.f32.gmra.mrb[0].mxu0 %v2472
      %v2606 = vpop.f32.mrb[0].mxu0
      %v2607 = vadd.f32 0.0, %v2606
      %v2608 = vpop.f32.mrb[0].mxu0
      %2609 = vmatprep.mubr.f32.mxu0 0.0
      %2610 = vmatmul.mubr.f32.gmra.mrb[0].mxu0 %v2473
      %v2611 = vpop.f32.mrb[0].mxu0
      %v2612 = vadd.f32 0.0, %v2611
      %v2613 = vpop.f32.mrb[0].mxu0
      %2614 = vmatprep.mubr.f32.mxu0 0.0
      %2615 = vmatmul.mubr.f32.gmra.mrb[0].mxu0 %v2474
      %v2616 = vpop.f32.mrb[0].mxu0
      %v2617 = vadd.f32 0.0, %v2616
      %v2618 = vpop.f32.mrb[0].mxu0
      %2619 = vmatprep.mubr.f32.mxu0 0.0
      %2620 = vmatmul.mubr.f32.gmra.mrb[0].mxu0 %v2475
      %v2621 = vpop.f32.mrb[0].mxu0
      %v2622 = vadd.f32 0.0, %v2621
      %v2623 = vpop.f32.mrb[0].mxu0
      %2624 = vmatprep.mubr.f32.mxu0 0.0
      %2625 = vmatmul.mubr.f32.gmra.mrb[0].mxu0 %v2476
      %v2626 = vpop.f32.mrb[0].mxu0
      %v2627 = vadd.f32 0.0, %v2626
      %v2628 = vpop.f32.mrb[0].mxu0
      %2629 = vmatprep.mubr.f32.mxu0 0.0
      %2630 = vmatmul.mubr.f32.gmra.mrb[0].mxu0 %v2477
      %v2631 = vpop.f32.mrb[0].mxu0
      %v2632 = vadd.f32 0.0, %v2631
      %v2633 = vpop.f32.mrb[0].mxu0
      %2634 = vmatprep.mubr.f32.mxu0 0.0
      %2635 = vmatmul.mubr.f32.gmra.mrb[0].mxu0 %v2478
      %v2636 = vpop.f32.mrb[0].mxu0
      %v2637 = vadd.f32 0.0, %v2636
      %v2638 = vpop.f32.mrb[0].mxu0
      %2639 = vdwg.mxu0
      %v2640 = vadd.f32 %v1861, %v2562
      %v2641 = vadd.f32 %v1862, %v2567
      %v2642 = vadd.f32 %v1863, %v2572
      %v2643 = vadd.f32 %v1864, %v2577
      %v2644 = vadd.f32 %v1865, %v2582
      %v2645 = vadd.f32 %v1866, %v2587
      %v2646 = vadd.f32 %v1867, %v2592
      %v2647 = vadd.f32 %v1868, %v2597
      %v2648 = vadd.f32 %v1869, %v2602
      %v2649 = vadd.f32 %v1870, %v2607
      %v2650 = vadd.f32 %v1871, %v2612
      %v2651 = vadd.f32 %v1872, %v2617
      %v2652 = vadd.f32 %v1873, %v2622
      %v2653 = vadd.f32 %v1874, %v2627
      %v2654 = vadd.f32 %v1875, %v2632
      %v2655 = vadd.f32 %v1876, %v2637
      %v2656 = vld [vmem:[%s13] sm:$0x1]
      %v2658 = vlaneseq
      %v2659 = vshrl.u32 %v2658, 7
      %v2660 = vsub.s32 0, %v2659
      %v2661 = vrot.slane %v2656, %v2660
      %v2663 = vadd.f32 %v2640, %v2661
      %v2664 = vadd.f32 %v2641, %v2661
      %v2665 = vadd.f32 %v2642, %v2661
      %v2666 = vadd.f32 %v2643, %v2661
      %v2667 = vadd.f32 %v2644, %v2661
      %v2668 = vadd.f32 %v2645, %v2661
      %v2669 = vadd.f32 %v2646, %v2661
      %v2670 = vadd.f32 %v2647, %v2661
      %v2671 = vadd.f32 %v2648, %v2661
      %v2672 = vadd.f32 %v2649, %v2661
      %v2673 = vadd.f32 %v2650, %v2661
      %v2674 = vadd.f32 %v2651, %v2661
      %v2675 = vadd.f32 %v2652, %v2661
      %v2676 = vadd.f32 %v2653, %v2661
      %v2677 = vadd.f32 %v2654, %v2661
      %v2678 = vadd.f32 %v2655, %v2661
      %2679 = vst.msk [vmem:[%s474] sm:$0xff] %vm494, %v2663
      %2680 = vst.msk [vmem:[%s474 + $0x8] sm:$0xff] %vm494, %v2664
      %2681 = vst.msk [vmem:[%s474 + $0x10] sm:$0xff] %vm494, %v2665
      %2682 = vst.msk [vmem:[%s474 + $0x18] sm:$0xff] %vm494, %v2666
      %2683 = vst.msk [vmem:[%s474 + $0x20] sm:$0xff] %vm494, %v2667
      %2684 = vst.msk [vmem:[%s474 + $0x28] sm:$0xff] %vm494, %v2668
      %2685 = vst.msk [vmem:[%s474 + $0x30] sm:$0xff] %vm494, %v2669
      %2686 = vst.msk [vmem:[%s474 + $0x38] sm:$0xff] %vm494, %v2670
      %2687 = vst.msk [vmem:[%s474 + $0x40] sm:$0xff] %vm494, %v2671
      %2688 = vst.msk [vmem:[%s474 + $0x48] sm:$0xff] %vm494, %v2672
      %2689 = vst.msk [vmem:[%s474 + $0x50] sm:$0xff] %vm494, %v2673
      %2690 = vst.msk [vmem:[%s474 + $0x58] sm:$0xff] %vm494, %v2674
      %2691 = vst.msk [vmem:[%s474 + $0x60] sm:$0xff] %vm494, %v2675
      %2692 = vst.msk [vmem:[%s474 + $0x68] sm:$0xff] %vm494, %v2676
      %2693 = vst.msk [vmem:[%s474 + $0x70] sm:$0xff] %vm494, %v2677
      %2694 = vst.msk [vmem:[%s474 + $0x78] sm:$0xff] %vm494, %v2678
      %s2695 = smul.u32 2, %s25
      %p2696 = scmp.lt.s32.totalorder %s2695, 7
      %s2697 = scalar_select %p2696, %s2695, 7
      %s2698 = smul.addr %s2697, 8
      %s2699 = smul.addr %s2698, 8
      %s2700 = scalar_lea.vmem %s14, %s2699
      // Predicated region
      $region77: #{tpu_custom_call.1} parent=75 // pred_check
        %p2701 = pneg %p342
      $region78: #{tpu_custom_call.1} parent=75 // pred_check_branch
        %2703 = sbr.rel (%p2701) target = $region80
      $region79: #{tpu_custom_call.1} parent=75 // pred_region
        %s2704 = smul.u32 2, %s25
      $region80: #{tpu_custom_call.1} parent=75 // pred_fallthru
        _
    $region76: #{tpu_custom_call.1} parent=5 // pred_fallthru
      _
    %p2705 = scmp.le.s32.totalorder 2, %s20
    // Predicated region
    $region81: #{tpu_custom_call.1} parent=5 // pred_check
      %p2706 = pneg %p2705
    $region82: #{tpu_custom_call.1} parent=5 // pred_check_branch
      %2708 = sbr.rel (%p2706) target = $region84
    $region83: #{tpu_custom_call.1} parent=5 // pred_region
      %s2709 = ssub.s32 %s20, 2
      // Predicated region
      $region85: #{tpu_custom_call.1} parent=83 // pred_check
        %p2710 = pneg %p348
      $region86: #{tpu_custom_call.1} parent=83 // pred_check_branch
        %2712 = sbr.rel (%p2710) target = $region88
      $region87: #{tpu_custom_call.1} parent=83 // pred_region
        %s2713 = smul.u32 2, %s26
        %p2714 = scmp.lt.s32.totalorder %s2713, 7
        %s2715 = scalar_select %p2714, %s2713, 7
        %s2716 = smul.addr %s2715, 8
        %s2717 = smul.addr %s2716, 8
        %s2718 = scalar_lea.vmem %s14, %s2717
      $region88: #{tpu_custom_call.1} parent=83 // pred_fallthru
        _
    $region84: #{tpu_custom_call.1} parent=5 // pred_fallthru
      _
  $region6: #{tpu_custom_call.1} parent=0 // loop_footer
    %s24 = sadd.s32 1, %s20
  $region7: #{tpu_custom_call.1} parent=0 // loop_footer_branch
    %19 = sbr.rel target = $region3
  $region8: #{tpu_custom_call.1} parent=0 // loop_exit
    _

</llo_original>
